<compile_context>
chip_gen: v7x
topology: tpu7x:2x2x1
jax: 0.10.0
libtpu: 0.0.40
codegen_flags: <defaults>
</compile_context>

<pallas_src>
import jax
import jax.numpy as jnp
import numpy as np
from jax.experimental import pallas as pl
from jax.experimental.pallas import tpu as pltpu


# ----------------------------------------------------------------------------
# Static shape bookkeeping
# ----------------------------------------------------------------------------
def _conv_stack_meta(cfg):
    """Per conv layer: (K, S, L_in, C_in, C_out); also returns final seq length T."""
    chans = [cfg["vocab_dim"]] + list(cfg["conv_channels"])
    meta = []
    L = cfg["text_width"]
    for c_in, c_out, k, s in zip(chans[:-1], chans[1:], cfg["conv_kernels"], cfg["conv_strides"]):
        meta.append((k, s, L, c_in, c_out))
        L = (L - k + 1) // s          # valid conv, then MaxPool1d floor semantics
    return meta, L


# ----------------------------------------------------------------------------
# Fused kernel: conv stack + RNN + mean-over-time + Linear, all in VMEM
# ----------------------------------------------------------------------------
def _build_fused_kernel(cfg, compute_dtype):
    conv_meta, T = _conv_stack_meta(cfg)
    n_conv = len(conv_meta)
    n_rnn = cfg["rnn_num_layers"]

    def kernel(*refs):
        it = iter(refs)
        x_ref = next(it)
        conv_w, conv_b = [], []
        for _ in range(n_conv):
            conv_w.append(next(it))
            conv_b.append(next(it))
        rnn_wx, rnn_wh, rnn_b = [], [], []
        for _ in range(n_rnn):
            rnn_wx.append(next(it))
            rnn_wh.append(next(it))
            rnn_b.append(next(it))
        lin_w_ref = next(it)
        lin_b_ref = next(it)
        o_ref = next(it)

        nb = x_ref.shape[0]
        slab = x_ref[...]                                    # (nb, L0, C0) f32, channels-last

        # ---- Conv1d -> MaxPool1d -> ReLU stack (Dropout: inference no-op) ----
        for (k, s, l_in, c_in, c_out), w_ref, b_ref in zip(conv_meta, conv_w, conv_b):
            l_conv = l_in - k + 1
            l_pool = l_conv // s
            slab_c = slab.astype(compute_dtype)              # MXU input dtype (cast once per layer)
            acc = None
            for t in range(k):                               # k accumulated matmuls, batch-stacked slab
                xt = slab_c[:, t:t + l_conv, :].reshape(nb * l_conv, c_in)
                m = jnp.dot(xt, w_ref[t], preferred_element_type=jnp.float32)
                acc = m if acc is None else acc + m
            conv = acc + b_ref[...]                          # (nb*l_conv, c_out) f32
            if s == 1:
                pooled = conv
            else:
                # MaxPool1d(kernel=s, stride=s) with floor semantics on the whole slab:
                # per-row trim, then non-overlapping windows as (nb*l_pool, s, c_out).
                win = conv.reshape(nb, l_conv, c_out)[:, :l_pool * s, :] \
                          .reshape(nb * l_pool, s, c_out)
                pooled = win[:, 0, :]
                for j in range(1, s):
                    pooled = jnp.maximum(pooled, win[:, j, :])
            slab = jnp.maximum(pooled, 0.0).reshape(nb, l_pool, c_out)   # ReLU (commutes with max)

        # ---- vanilla RNN (nonlinearity='relu', batch_first, h0 = 0, unidirectional) ----
        outs = None
        for li in range(n_rnn):
            c_in = slab.shape[-1]
            h_dim = rnn_wh[li].shape[0]
            # Hoisted input projection: ONE matmul for all timesteps (+ bias added once).
            xproj = (jnp.dot(slab.reshape(nb * T, c_in).astype(compute_dtype),
                             rnn_wx[li][...], preferred_element_type=jnp.float32)
                     + rnn_b[li][...]).reshape(nb, T, h_dim)
            wh = rnn_wh[li][...]
            h_t = jnp.zeros((nb, h_dim), jnp.float32)
            outs = []
            for t in range(T):                               # T is small & static -> unrolled
                pre = xproj[:, t, :] + jnp.dot(h_t.astype(compute_dtype), wh,
                                               preferred_element_type=jnp.float32)
                h_t = jnp.maximum(pre, 0.0)
                outs.append(h_t)
            if li + 1 < n_rnn:
                slab = jnp.stack(outs, axis=1)               # (nb, T, H) input for the next layer

        # ---- compute_mean_hidden + emb_mapper: 1/T is folded into lin_w at pack time ----
        sum_h = outs[0]
        for t in range(1, T):
            sum_h = sum_h + outs[t]
        out = (jnp.dot(sum_h.astype(compute_dtype), lin_w_ref[...],
                       preferred_element_type=jnp.float32) + lin_b_ref[...])
        o_ref[...] = out.astype(o_ref.dtype)

    return kernel


# ----------------------------------------------------------------------------
# Jitted forward wrapper (built once per config)
# ----------------------------------------------------------------------------
def make_hybridcnn_forward(cfg, compute_dtype=jnp.float32):
    """compute_dtype=jnp.bfloat16 is recommended on v6e/v7x (MXU inputs); accumulation stays f32."""
    kernel = _build_fused_kernel(cfg, compute_dtype)
    L0, C0, E = cfg["text_width"], cfg["vocab_dim"], cfg["emb_dim"]

    def _const_spec(shape):
        zeros = (0,) * len(shape)
        return pl.BlockSpec(shape, lambda i: zeros)

    def _block_rows(n):
        # Whole batch for tiny N; otherwise ~N/2 rounded to a sublane multiple so the grid
        # has >=2 "parallel" steps (both v7x TensorCores get work), capped at 256 rows.
        if n <= 8:
            return n
        nb = ((-(-n // 2) + 7) // 8) * 8
        return min(nb, 256)

    def forward(params, x_ncl):
        n = x_ncl.shape[0]
        nb = _block_rows(n)
        x_nlc = jnp.transpose(x_ncl, (0, 2, 1))         # NCL -> channels-last, once, under jit

        inputs = [x_nlc]
        in_specs = [pl.BlockSpec((nb, L0, C0), lambda i: (i, 0, 0))]
        for layer in params["conv"]:
            inputs += [layer["w"], layer["b"]]
            in_specs += [_const_spec(layer["w"].shape), _const_spec(layer["b"].shape)]
        for layer in params["rnn"]:
            inputs += [layer["wx"], layer["wh"], layer["b"]]
            in_specs += [_const_spec(layer["wx"].shape), _const_spec(layer["wh"].shape),
                         _const_spec(layer["b"].shape)]
        inputs += [params["lin_w"], params["lin_b"]]
        in_specs += [_const_spec(params["lin_w"].shape), _const_spec(params["lin_b"].shape)]

        return pl.pallas_call(
            kernel,
            out_shape=jax.ShapeDtypeStruct((n, E), jnp.float32),
            grid=(pl.cdiv(n, nb),),
            in_specs=in_specs,
            out_specs=pl.BlockSpec((nb, E), lambda i: (i, 0)),
            compiler_params=pltpu.CompilerParams(
                dimension_semantics=("parallel",)),      # shard batch blocks across v7x's 2 TCs
        )(*inputs)

    return jax.jit(forward)


# ----------------------------------------------------------------------------
# Parameters: PyTorch-shaped init + one-time packing into kernel layouts
# ----------------------------------------------------------------------------
def init_hybridcnn_params(key, cfg):
    """PyTorch-convention parameter shapes (nn.Conv1d / nn.RNN / nn.Linear)."""
    chans = [cfg["vocab_dim"]] + list(cfg["conv_channels"])
    h = cfg["rnn_hidden_size"]
    raw = {"conv": [], "rnn": []}
    for c_in, c_out, k, s in zip(chans[:-1], chans[1:], cfg["conv_kernels"], cfg["conv_strides"]):
        key, kw, kb = jax.random.split(key, 3)
        raw["conv"].append({
            "w": jax.random.normal(kw, (c_out, c_in, k), jnp.float32) * 0.1,  # (C_out, C_in, K)
            "b": jax.random.normal(kb, (c_out,), jnp.float32) * 0.1,
            "k": k, "s": s,
        })
    rnn_in = chans[-1]
    for _ in range(cfg["rnn_num_layers"]):
        key, k1, k2, k3, k4 = jax.random.split(key, 5)
        raw["rnn"].append({
            "w_ih": jax.random.normal(k1, (h, rnn_in), jnp.float32) * 0.1,
            "w_hh": jax.random.normal(k2, (h, h), jnp.float32) * 0.1,
            "b_ih": jax.random.normal(k3, (h,), jnp.float32) * 0.1,
            "b_hh": jax.random.normal(k4, (h,), jnp.float32) * 0.1,
        })
        rnn_in = h
    key, kw, kb = jax.random.split(key, 3)
    raw["lin_w"] = jax.random.normal(kw, (cfg["emb_dim"], h), jnp.float32) * 0.05
    raw["lin_b"] = jax.random.normal(kb, (cfg["emb_dim"],), jnp.float32) * 0.05
    return raw


def pack_params(raw, cfg, compute_dtype=jnp.float32):
    """One-time re-layout of PyTorch weights into the kernel's layouts (no per-call transposes).
    Matmul weights are stored in compute_dtype (bf16 on v6e/v7x if desired); biases stay f32."""
    _, T = _conv_stack_meta(cfg)
    packed = {"conv": [], "rnn": []}
    for layer in raw["conv"]:
        w = layer["w"]                                   # (C_out, C_in, K)
        packed["conv"].append({
            "w": jnp.transpose(w, (2, 1, 0)).astype(compute_dtype),    # per-tap (K, C_in, C_out)
            "b": layer["b"][None, :].astype(jnp.float32),
        })
    for layer in raw["rnn"]:
        packed["rnn"].append({
            "wx": layer["w_ih"].T.astype(compute_dtype),               # (C_in, H)
            "wh": layer["w_hh"].T.astype(compute_dtype),               # (H, H)
            "b": (layer["b_ih"] + layer["b_hh"])[None, :].astype(jnp.float32),
        })
    packed["lin_w"] = (raw["lin_w"].T / float(T)).astype(compute_dtype)  # (H, E), 1/T folded in
    packed["lin_b"] = raw["lin_b"][None, :].astype(jnp.float32)
    return packed


# ----------------------------------------------------------------------------
# Pure-JAX reference mirroring HybridCNN.forward (default config, eval mode)
# ----------------------------------------------------------------------------
def hybridcnn_forward_ref(raw, x_ncl):
    h = x_ncl                                            # (N, C, L)
    for layer in raw["conv"]:
        w, b, k, s = layer["w"], layer["b"], layer["k"], layer["s"]
        l_conv = h.shape[2] - k + 1
        cols = jnp.stack([h[:, :, t:t + l_conv] for t in range(k)], axis=-1)  # (N, C_in, L_conv, K)
        conv = jnp.einsum("nclk,ock->nol", cols, w) + b[None, :, None]
        l_pool = l_conv // s
        pooled = conv[:, :, : l_pool * s].reshape(conv.shape[0], conv.shape[1], l_pool, s).max(-1)
        h = jnp.maximum(pooled, 0.0)
    seq = jnp.transpose(h, (0, 2, 1))                    # (N, T, C), batch_first RNN input
    for layer in raw["rnn"]:
        w_ih, w_hh, b_ih, b_hh = layer["w_ih"], layer["w_hh"], layer["b_ih"], layer["b_hh"]
        n, t_len, _ = seq.shape
        h_t = jnp.zeros((n, w_hh.shape[0]), jnp.float32)
        outs = []
        for t in range(t_len):
            h_t = jnp.maximum(seq[:, t, :] @ w_ih.T + b_ih + h_t @ w_hh.T + b_hh, 0.0)
            outs.append(h_t)
        seq = jnp.stack(outs, axis=1)
    mean_h = seq.mean(axis=1)                            # compute_mean_hidden (unidirectional)
    return mean_h @ raw["lin_w"].T + raw["lin_b"][None, :]


# ----------------------------------------------------------------------------
if __name__ == "__main__":
    cfg = dict(
        vocab_dim=16, text_width=20,
        conv_channels=[16, 32], conv_kernels=[3, 3], conv_strides=[2, 2],
        rnn_hidden_size=32, rnn_num_layers=1, emb_dim=128,
    )

    key = jax.random.PRNGKey(0)
    key, kx, kx2 = jax.random.split(key, 3)
    raw = init_hybridcnn_params(key, cfg)

    # --- f32 MXU-input path (exactly matches the reference) ---
    packed = pack_params(raw, cfg)
    forward = make_hybridcnn_forward(cfg)
    x = jax.random.normal(kx, (2, cfg["vocab_dim"], cfg["text_width"]), jnp.float32)   # (N, C, L)
    out = jax.block_until_ready(forward(packed, x))
    ref = jax.block_until_ready(hybridcnn_forward_ref(raw, x))
    np.testing.assert_allclose(np.asarray(out), np.asarray(ref), rtol=1e-4, atol=1e-4)
    assert out.shape == (2, cfg["emb_dim"])

    # --- non-multiple batch: exercises the padded tail grid step (nb=8, grid=2) ---
    x10 = jax.random.normal(kx2, (10, cfg["vocab_dim"], cfg["text_width"]), jnp.float32)
    out10 = jax.block_until_ready(forward(packed, x10))
    ref10 = jax.block_until_ready(hybridcnn_forward_ref(raw, x10))
    np.testing.assert_allclose(np.asarray(out10), np.asarray(ref10), rtol=1e-4, atol=1e-4)

    # --- bf16 MXU-input path (recommended on v6e/v7x; f32 accumulation) ---
    packed_bf16 = pack_params(raw, cfg, compute_dtype=jnp.bfloat16)
    forward_bf16 = make_hybridcnn_forward(cfg, compute_dtype=jnp.bfloat16)
    out_bf16 = jax.block_until_ready(forward_bf16(packed_bf16, x))
    np.testing.assert_allclose(np.asarray(out_bf16), np.asarray(ref), rtol=5e-2, atol=5e-2)

    print("KERNEL_OK")
</pallas_src>

<mosaic_0001>
module attributes {stable_mosaic.version = 11 : i64} {
  func.func @kernel(%arg0: i32, %arg1: memref<2x20x16xf32, #tpu.memory_space<vmem>>, %arg2: memref<3x16x16xf32, #tpu.memory_space<vmem>>, %arg3: memref<1x16xf32, #tpu.memory_space<vmem>>, %arg4: memref<3x16x32xf32, #tpu.memory_space<vmem>>, %arg5: memref<1x32xf32, #tpu.memory_space<vmem>>, %arg6: memref<32x32xf32, #tpu.memory_space<vmem>>, %arg7: memref<32x32xf32, #tpu.memory_space<vmem>>, %arg8: memref<1x32xf32, #tpu.memory_space<vmem>>, %arg9: memref<32x128xf32, #tpu.memory_space<vmem>>, %arg10: memref<1x128xf32, #tpu.memory_space<vmem>>, %arg11: memref<2x128xf32, #tpu.memory_space<vmem>>) attributes {dimension_semantics = [#tpu.dimension_semantics<parallel>], iteration_bounds = array<i64: 1>, scalar_prefetch = 0 : i64, scratch_operands = 0 : i64, tpu.core_type = #tpu.core_type<tc>, window_params = [{transform_indices = @transform_0, window_bounds = array<i64: 2, 20, 16>}, {pipeline_mode = #tpu.pipeline_mode<synchronous>, transform_indices = @transform_1, window_bounds = array<i64: 3, 16, 16>}, {pipeline_mode = #tpu.pipeline_mode<synchronous>, transform_indices = @transform_2, window_bounds = array<i64: 1, 16>}, {pipeline_mode = #tpu.pipeline_mode<synchronous>, transform_indices = @transform_3, window_bounds = array<i64: 3, 16, 32>}, {pipeline_mode = #tpu.pipeline_mode<synchronous>, transform_indices = @transform_4, window_bounds = array<i64: 1, 32>}, {pipeline_mode = #tpu.pipeline_mode<synchronous>, transform_indices = @transform_5, window_bounds = array<i64: 32, 32>}, {pipeline_mode = #tpu.pipeline_mode<synchronous>, transform_indices = @transform_6, window_bounds = array<i64: 32, 32>}, {pipeline_mode = #tpu.pipeline_mode<synchronous>, transform_indices = @transform_7, window_bounds = array<i64: 1, 32>}, {pipeline_mode = #tpu.pipeline_mode<synchronous>, transform_indices = @transform_8, window_bounds = array<i64: 32, 128>}, {pipeline_mode = #tpu.pipeline_mode<synchronous>, transform_indices = @transform_9, window_bounds = array<i64: 1, 128>}, {transform_indices = @transform_10, window_bounds = array<i64: 2, 128>}]} {
    %c0 = arith.constant 0 : index
    %c0_0 = arith.constant 0 : index
    %c0_1 = arith.constant 0 : index
    %0 = vector.load %arg1[%c0, %c0_0, %c0_1] : memref<2x20x16xf32, #tpu.memory_space<vmem>>, vector<2x20x16xf32>
    %1 = vector.extract_strided_slice %0 {offsets = [0, 0, 0], sizes = [2, 18, 16], strides = [1, 1, 1]} : vector<2x20x16xf32> to vector<2x18x16xf32>
    %2 = vector.shape_cast %1 : vector<2x18x16xf32> to vector<36x16xf32>
    %c0_2 = arith.constant 0 : index
    %c0_3 = arith.constant 0 : index
    %c0_4 = arith.constant 0 : index
    %3 = vector.load %arg2[%c0_2, %c0_3, %c0_4] : memref<3x16x16xf32, #tpu.memory_space<vmem>>, vector<1x16x16xf32>
    %4 = vector.shape_cast %3 : vector<1x16x16xf32> to vector<16x16xf32>
    %cst = arith.constant dense<0.000000e+00> : vector<36x16xf32>
    %5 = tpu.matmul %2, %4, %cst {dimension_numbers = #tpu.dot_dimension_numbers<[1], [0], [0], [1], [0, 0, 1, 1], [], []>} : vector<36x16xf32>, vector<16x16xf32>, vector<36x16xf32> -> vector<36x16xf32>
    %6 = vector.extract_strided_slice %0 {offsets = [0, 1, 0], sizes = [2, 18, 16], strides = [1, 1, 1]} : vector<2x20x16xf32> to vector<2x18x16xf32>
    %7 = vector.shape_cast %6 : vector<2x18x16xf32> to vector<36x16xf32>
    %c1 = arith.constant 1 : index
    %c0_5 = arith.constant 0 : index
    %c0_6 = arith.constant 0 : index
    %8 = vector.load %arg2[%c1, %c0_5, %c0_6] : memref<3x16x16xf32, #tpu.memory_space<vmem>>, vector<1x16x16xf32>
    %9 = vector.shape_cast %8 : vector<1x16x16xf32> to vector<16x16xf32>
    %cst_7 = arith.constant dense<0.000000e+00> : vector<36x16xf32>
    %10 = tpu.matmul %7, %9, %cst_7 {dimension_numbers = #tpu.dot_dimension_numbers<[1], [0], [0], [1], [0, 0, 1, 1], [], []>} : vector<36x16xf32>, vector<16x16xf32>, vector<36x16xf32> -> vector<36x16xf32>
    %11 = arith.addf %5, %10 : vector<36x16xf32>
    %12 = vector.extract_strided_slice %0 {offsets = [0, 2, 0], sizes = [2, 18, 16], strides = [1, 1, 1]} : vector<2x20x16xf32> to vector<2x18x16xf32>
    %13 = vector.shape_cast %12 : vector<2x18x16xf32> to vector<36x16xf32>
    %c2 = arith.constant 2 : index
    %c0_8 = arith.constant 0 : index
    %c0_9 = arith.constant 0 : index
    %14 = vector.load %arg2[%c2, %c0_8, %c0_9] : memref<3x16x16xf32, #tpu.memory_space<vmem>>, vector<1x16x16xf32>
    %15 = vector.shape_cast %14 : vector<1x16x16xf32> to vector<16x16xf32>
    %cst_10 = arith.constant dense<0.000000e+00> : vector<36x16xf32>
    %16 = tpu.matmul %13, %15, %cst_10 {dimension_numbers = #tpu.dot_dimension_numbers<[1], [0], [0], [1], [0, 0, 1, 1], [], []>} : vector<36x16xf32>, vector<16x16xf32>, vector<36x16xf32> -> vector<36x16xf32>
    %17 = arith.addf %11, %16 : vector<36x16xf32>
    %c0_11 = arith.constant 0 : index
    %c0_12 = arith.constant 0 : index
    %18 = vector.load %arg3[%c0_11, %c0_12] : memref<1x16xf32, #tpu.memory_space<vmem>>, vector<1x16xf32>
    %19 = vector.broadcast %18 : vector<1x16xf32> to vector<36x16xf32>
    %20 = arith.addf %17, %19 : vector<36x16xf32>
    %21 = vector.shape_cast %20 : vector<36x16xf32> to vector<2x18x16xf32>
    %22 = vector.shape_cast %21 : vector<2x18x16xf32> to vector<18x2x16xf32>
    %23 = vector.extract_strided_slice %22 {offsets = [0, 0, 0], sizes = [18, 1, 16], strides = [1, 1, 1]} : vector<18x2x16xf32> to vector<18x1x16xf32>
    %24 = vector.shape_cast %23 : vector<18x1x16xf32> to vector<18x16xf32>
    %25 = vector.extract_strided_slice %22 {offsets = [0, 1, 0], sizes = [18, 1, 16], strides = [1, 1, 1]} : vector<18x2x16xf32> to vector<18x1x16xf32>
    %26 = vector.shape_cast %25 : vector<18x1x16xf32> to vector<18x16xf32>
    %27 = arith.maximumf %24, %26 : vector<18x16xf32>
    %cst_13 = arith.constant 0.000000e+00 : f32
    %28 = vector.broadcast %cst_13 : f32 to vector<18x16xf32>
    %29 = arith.maximumf %27, %28 : vector<18x16xf32>
    %30 = vector.shape_cast %29 : vector<18x16xf32> to vector<2x9x16xf32>
    %31 = vector.extract_strided_slice %30 {offsets = [0, 0, 0], sizes = [2, 7, 16], strides = [1, 1, 1]} : vector<2x9x16xf32> to vector<2x7x16xf32>
    %32 = vector.shape_cast %31 : vector<2x7x16xf32> to vector<14x16xf32>
    %c0_14 = arith.constant 0 : index
    %c0_15 = arith.constant 0 : index
    %c0_16 = arith.constant 0 : index
    %33 = vector.load %arg4[%c0_14, %c0_15, %c0_16] : memref<3x16x32xf32, #tpu.memory_space<vmem>>, vector<1x16x32xf32>
    %34 = vector.shape_cast %33 : vector<1x16x32xf32> to vector<16x32xf32>
    %cst_17 = arith.constant dense<0.000000e+00> : vector<14x32xf32>
    %35 = tpu.matmul %32, %34, %cst_17 {dimension_numbers = #tpu.dot_dimension_numbers<[1], [0], [0], [1], [0, 0, 1, 1], [], []>} : vector<14x16xf32>, vector<16x32xf32>, vector<14x32xf32> -> vector<14x32xf32>
    %36 = vector.extract_strided_slice %30 {offsets = [0, 1, 0], sizes = [2, 7, 16], strides = [1, 1, 1]} : vector<2x9x16xf32> to vector<2x7x16xf32>
    %37 = vector.shape_cast %36 : vector<2x7x16xf32> to vector<14x16xf32>
    %c1_18 = arith.constant 1 : index
    %c0_19 = arith.constant 0 : index
    %c0_20 = arith.constant 0 : index
    %38 = vector.load %arg4[%c1_18, %c0_19, %c0_20] : memref<3x16x32xf32, #tpu.memory_space<vmem>>, vector<1x16x32xf32>
    %39 = vector.shape_cast %38 : vector<1x16x32xf32> to vector<16x32xf32>
    %cst_21 = arith.constant dense<0.000000e+00> : vector<14x32xf32>
    %40 = tpu.matmul %37, %39, %cst_21 {dimension_numbers = #tpu.dot_dimension_numbers<[1], [0], [0], [1], [0, 0, 1, 1], [], []>} : vector<14x16xf32>, vector<16x32xf32>, vector<14x32xf32> -> vector<14x32xf32>
    %41 = arith.addf %35, %40 : vector<14x32xf32>
    %42 = vector.extract_strided_slice %30 {offsets = [0, 2, 0], sizes = [2, 7, 16], strides = [1, 1, 1]} : vector<2x9x16xf32> to vector<2x7x16xf32>
    %43 = vector.shape_cast %42 : vector<2x7x16xf32> to vector<14x16xf32>
    %c2_22 = arith.constant 2 : index
    %c0_23 = arith.constant 0 : index
    %c0_24 = arith.constant 0 : index
    %44 = vector.load %arg4[%c2_22, %c0_23, %c0_24] : memref<3x16x32xf32, #tpu.memory_space<vmem>>, vector<1x16x32xf32>
    %45 = vector.shape_cast %44 : vector<1x16x32xf32> to vector<16x32xf32>
    %cst_25 = arith.constant dense<0.000000e+00> : vector<14x32xf32>
    %46 = tpu.matmul %43, %45, %cst_25 {dimension_numbers = #tpu.dot_dimension_numbers<[1], [0], [0], [1], [0, 0, 1, 1], [], []>} : vector<14x16xf32>, vector<16x32xf32>, vector<14x32xf32> -> vector<14x32xf32>
    %47 = arith.addf %41, %46 : vector<14x32xf32>
    %c0_26 = arith.constant 0 : index
    %c0_27 = arith.constant 0 : index
    %48 = vector.load %arg5[%c0_26, %c0_27] : memref<1x32xf32, #tpu.memory_space<vmem>>, vector<1x32xf32>
    %49 = vector.broadcast %48 : vector<1x32xf32> to vector<14x32xf32>
    %50 = arith.addf %47, %49 : vector<14x32xf32>
    %51 = vector.shape_cast %50 : vector<14x32xf32> to vector<2x7x32xf32>
    %52 = vector.extract_strided_slice %51 {offsets = [0, 0, 0], sizes = [2, 6, 32], strides = [1, 1, 1]} : vector<2x7x32xf32> to vector<2x6x32xf32>
    %53 = vector.shape_cast %52 : vector<2x6x32xf32> to vector<6x2x32xf32>
    %54 = vector.extract_strided_slice %53 {offsets = [0, 0, 0], sizes = [6, 1, 32], strides = [1, 1, 1]} : vector<6x2x32xf32> to vector<6x1x32xf32>
    %55 = vector.shape_cast %54 : vector<6x1x32xf32> to vector<6x32xf32>
    %56 = vector.extract_strided_slice %53 {offsets = [0, 1, 0], sizes = [6, 1, 32], strides = [1, 1, 1]} : vector<6x2x32xf32> to vector<6x1x32xf32>
    %57 = vector.shape_cast %56 : vector<6x1x32xf32> to vector<6x32xf32>
    %58 = arith.maximumf %55, %57 : vector<6x32xf32>
    %cst_28 = arith.constant 0.000000e+00 : f32
    %59 = vector.broadcast %cst_28 : f32 to vector<6x32xf32>
    %60 = arith.maximumf %58, %59 : vector<6x32xf32>
    %61 = vector.shape_cast %60 : vector<6x32xf32> to vector<2x3x32xf32>
    %62 = vector.shape_cast %61 : vector<2x3x32xf32> to vector<6x32xf32>
    %c0_29 = arith.constant 0 : index
    %c0_30 = arith.constant 0 : index
    %63 = vector.load %arg6[%c0_29, %c0_30] : memref<32x32xf32, #tpu.memory_space<vmem>>, vector<32x32xf32>
    %cst_31 = arith.constant dense<0.000000e+00> : vector<6x32xf32>
    %64 = tpu.matmul %62, %63, %cst_31 {dimension_numbers = #tpu.dot_dimension_numbers<[1], [0], [0], [1], [0, 0, 1, 1], [], []>} : vector<6x32xf32>, vector<32x32xf32>, vector<6x32xf32> -> vector<6x32xf32>
    %c0_32 = arith.constant 0 : index
    %c0_33 = arith.constant 0 : index
    %65 = vector.load %arg8[%c0_32, %c0_33] : memref<1x32xf32, #tpu.memory_space<vmem>>, vector<1x32xf32>
    %66 = vector.broadcast %65 : vector<1x32xf32> to vector<6x32xf32>
    %67 = arith.addf %64, %66 : vector<6x32xf32>
    %68 = vector.shape_cast %67 : vector<6x32xf32> to vector<2x3x32xf32>
    %c0_34 = arith.constant 0 : index
    %c0_35 = arith.constant 0 : index
    %69 = vector.load %arg7[%c0_34, %c0_35] : memref<32x32xf32, #tpu.memory_space<vmem>>, vector<32x32xf32>
    %cst_36 = arith.constant 0.000000e+00 : f32
    %70 = vector.broadcast %cst_36 : f32 to vector<2x32xf32>
    %71 = vector.extract_strided_slice %68 {offsets = [0, 0, 0], sizes = [2, 1, 32], strides = [1, 1, 1]} : vector<2x3x32xf32> to vector<2x1x32xf32>
    %72 = vector.shape_cast %71 : vector<2x1x32xf32> to vector<2x32xf32>
    %cst_37 = arith.constant dense<0.000000e+00> : vector<2x32xf32>
    %73 = tpu.matmul %70, %69, %cst_37 {dimension_numbers = #tpu.dot_dimension_numbers<[1], [0], [0], [1], [0, 0, 1, 1], [], []>} : vector<2x32xf32>, vector<32x32xf32>, vector<2x32xf32> -> vector<2x32xf32>
    %74 = arith.addf %72, %73 : vector<2x32xf32>
    %cst_38 = arith.constant 0.000000e+00 : f32
    %75 = vector.broadcast %cst_38 : f32 to vector<2x32xf32>
    %76 = arith.maximumf %74, %75 : vector<2x32xf32>
    %77 = vector.extract_strided_slice %68 {offsets = [0, 1, 0], sizes = [2, 1, 32], strides = [1, 1, 1]} : vector<2x3x32xf32> to vector<2x1x32xf32>
    %78 = vector.shape_cast %77 : vector<2x1x32xf32> to vector<2x32xf32>
    %cst_39 = arith.constant dense<0.000000e+00> : vector<2x32xf32>
    %79 = tpu.matmul %76, %69, %cst_39 {dimension_numbers = #tpu.dot_dimension_numbers<[1], [0], [0], [1], [0, 0, 1, 1], [], []>} : vector<2x32xf32>, vector<32x32xf32>, vector<2x32xf32> -> vector<2x32xf32>
    %80 = arith.addf %78, %79 : vector<2x32xf32>
    %cst_40 = arith.constant 0.000000e+00 : f32
    %81 = vector.broadcast %cst_40 : f32 to vector<2x32xf32>
    %82 = arith.maximumf %80, %81 : vector<2x32xf32>
    %83 = vector.extract_strided_slice %68 {offsets = [0, 2, 0], sizes = [2, 1, 32], strides = [1, 1, 1]} : vector<2x3x32xf32> to vector<2x1x32xf32>
    %84 = vector.shape_cast %83 : vector<2x1x32xf32> to vector<2x32xf32>
    %cst_41 = arith.constant dense<0.000000e+00> : vector<2x32xf32>
    %85 = tpu.matmul %82, %69, %cst_41 {dimension_numbers = #tpu.dot_dimension_numbers<[1], [0], [0], [1], [0, 0, 1, 1], [], []>} : vector<2x32xf32>, vector<32x32xf32>, vector<2x32xf32> -> vector<2x32xf32>
    %86 = arith.addf %84, %85 : vector<2x32xf32>
    %cst_42 = arith.constant 0.000000e+00 : f32
    %87 = vector.broadcast %cst_42 : f32 to vector<2x32xf32>
    %88 = arith.maximumf %86, %87 : vector<2x32xf32>
    %89 = arith.addf %76, %82 : vector<2x32xf32>
    %90 = arith.addf %89, %88 : vector<2x32xf32>
    %c0_43 = arith.constant 0 : index
    %c0_44 = arith.constant 0 : index
    %91 = vector.load %arg9[%c0_43, %c0_44] : memref<32x128xf32, #tpu.memory_space<vmem>>, vector<32x128xf32>
    %cst_45 = arith.constant dense<0.000000e+00> : vector<2x128xf32>
    %92 = tpu.matmul %90, %91, %cst_45 {dimension_numbers = #tpu.dot_dimension_numbers<[1], [0], [0], [1], [0, 0, 1, 1], [], []>} : vector<2x32xf32>, vector<32x128xf32>, vector<2x128xf32> -> vector<2x128xf32>
    %c0_46 = arith.constant 0 : index
    %c0_47 = arith.constant 0 : index
    %93 = vector.load %arg10[%c0_46, %c0_47] : memref<1x128xf32, #tpu.memory_space<vmem>>, vector<1x128xf32>
    %94 = vector.broadcast %93 : vector<1x128xf32> to vector<2x128xf32>
    %95 = arith.addf %92, %94 : vector<2x128xf32>
    %c0_48 = arith.constant 0 : index
    %c0_49 = arith.constant 0 : index
    %96 = vector.load %arg11[%c0_48, %c0_49] : memref<2x128xf32, #tpu.memory_space<vmem>>, vector<2x128xf32>
    tpu.vector_store %arg11[%c0_48, %c0_49], %95 {strides = array<i32>} : memref<2x128xf32, #tpu.memory_space<vmem>>, vector<2x128xf32>,
    return
  }
  func.func @transform_0(%arg0: i32) -> (i32, i32, i32) {
    %c0_i32 = arith.constant 0 : i32
    %c0_i32_0 = arith.constant 0 : i32
    %c0_i32_1 = arith.constant 0 : i32
    return %arg0, %c0_i32, %c0_i32_0 : i32, i32, i32
  }
  func.func @transform_1(%arg0: i32) -> (i32, i32, i32) {
    %c0_i32 = arith.constant 0 : i32
    %c0_i32_0 = arith.constant 0 : i32
    %c0_i32_1 = arith.constant 0 : i32
    %c0_i32_2 = arith.constant 0 : i32
    return %c0_i32, %c0_i32_0, %c0_i32_1 : i32, i32, i32
  }
  func.func @transform_2(%arg0: i32) -> (i32, i32) {
    %c0_i32 = arith.constant 0 : i32
    %c0_i32_0 = arith.constant 0 : i32
    %c0_i32_1 = arith.constant 0 : i32
    return %c0_i32, %c0_i32_0 : i32, i32
  }
  func.func @transform_3(%arg0: i32) -> (i32, i32, i32) {
    %c0_i32 = arith.constant 0 : i32
    %c0_i32_0 = arith.constant 0 : i32
    %c0_i32_1 = arith.constant 0 : i32
    %c0_i32_2 = arith.constant 0 : i32
    return %c0_i32, %c0_i32_0, %c0_i32_1 : i32, i32, i32
  }
  func.func @transform_4(%arg0: i32) -> (i32, i32) {
    %c0_i32 = arith.constant 0 : i32
    %c0_i32_0 = arith.constant 0 : i32
    %c0_i32_1 = arith.constant 0 : i32
    return %c0_i32, %c0_i32_0 : i32, i32
  }
  func.func @transform_5(%arg0: i32) -> (i32, i32) {
    %c0_i32 = arith.constant 0 : i32
    %c0_i32_0 = arith.constant 0 : i32
    %c0_i32_1 = arith.constant 0 : i32
    return %c0_i32, %c0_i32_0 : i32, i32
  }
  func.func @transform_6(%arg0: i32) -> (i32, i32) {
    %c0_i32 = arith.constant 0 : i32
    %c0_i32_0 = arith.constant 0 : i32
    %c0_i32_1 = arith.constant 0 : i32
    return %c0_i32, %c0_i32_0 : i32, i32
  }
  func.func @transform_7(%arg0: i32) -> (i32, i32) {
    %c0_i32 = arith.constant 0 : i32
    %c0_i32_0 = arith.constant 0 : i32
    %c0_i32_1 = arith.constant 0 : i32
    return %c0_i32, %c0_i32_0 : i32, i32
  }
  func.func @transform_8(%arg0: i32) -> (i32, i32) {
    %c0_i32 = arith.constant 0 : i32
    %c0_i32_0 = arith.constant 0 : i32
    %c0_i32_1 = arith.constant 0 : i32
    return %c0_i32, %c0_i32_0 : i32, i32
  }
  func.func @transform_9(%arg0: i32) -> (i32, i32) {
    %c0_i32 = arith.constant 0 : i32
    %c0_i32_0 = arith.constant 0 : i32
    %c0_i32_1 = arith.constant 0 : i32
    return %c0_i32, %c0_i32_0 : i32, i32
  }
  func.func @transform_10(%arg0: i32) -> (i32, i32) {
    %c0_i32 = arith.constant 0 : i32
    %c0_i32_0 = arith.constant 0 : i32
    return %arg0, %c0_i32 : i32, i32
  }
}

</mosaic_0001>

<llo_original>
// kernel: forward.1
$region0: #{forward.1}
  #allocation0 [shape = 'u32[]', space=smem, size = 0x4, offset = 0x4, fixed_abs, tag = 'smem constant byte address 0x4 - core index']
  #allocation1 [shape = 'u32[144,128]{1,0:T(1,128)}', space=vmem, size = 0x12000, scoped, tag = 'internal scratch']
  %s0 = inlined_call_operand.vmem [shape: f32[2,20,16], index: 0, kind: input, shape index: {}]
  %s1 = inlined_call_operand.vmem [shape: f32[3,16,16], index: 1, kind: input, shape index: {}]
  %s2 = inlined_call_operand.vmem [shape: f32[1,16], index: 2, kind: input, shape index: {}]
  %s3 = inlined_call_operand.hbm [shape: f32[3,16,32], index: 3, kind: input, shape index: {}]
  %s4 = inlined_call_operand.vmem [shape: f32[1,32], index: 4, kind: input, shape index: {}]
  %s5 = inlined_call_operand.vmem [shape: f32[32,32], index: 5, kind: input, shape index: {}]
  %s6 = inlined_call_operand.hbm [shape: f32[32,32], index: 6, kind: input, shape index: {}]
  %s7 = inlined_call_operand.vmem [shape: f32[1,32], index: 7, kind: input, shape index: {}]
  %s8 = inlined_call_operand.hbm [shape: f32[32,128], index: 8, kind: input, shape index: {}]
  %s9 = inlined_call_operand.vmem [shape: f32[1,128], index: 9, kind: input, shape index: {}]
  %s10 = inlined_call_operand.hbm [shape: f32[2,128], index: 10, kind: output, shape index: {}]
  %s11 = sld [smem:[#allocation0]]
  $region62: #{forward.1} parent=0
    _
  %s13 = ssub.s32 1, %s11
  %s14 = scalar_select 0, %s13, %s11
  $region1: #{forward.1} parent=0
    #allocation2 [shape = 'u8[24576]{0}', space=vmem, size = 0x6000, scoped, tag = 'input window, operand 3, single buffered']
    #allocation3 [shape = 's32[1]{0}', space=sflag, size = 0x4, scoped, tag = 'scoped memory for forward.1']
    #allocation4 [shape = 's32[1]{0}', space=sflag, size = 0x4, scoped, tag = 'scoped memory for forward.1']
    #allocation5 [shape = 'u8[16384]{0}', space=vmem, size = 0x4000, scoped, tag = 'input window, operand 6, single buffered']
    #allocation6 [shape = 's32[1]{0}', space=sflag, size = 0x4, scoped, tag = 'scoped memory for forward.1']
    #allocation7 [shape = 'u8[16384]{0}', space=vmem, size = 0x4000, scoped, tag = 'input window, operand 8, single buffered']
    #allocation8 [shape = 'u8[1024]{0}', space=vmem, size = 0x400, scoped, tag = 'output window, operand 0, single buffered']
    %15 = vsyncpa [#allocation3], 0
    %16 = vsyncpa [#allocation6], 0
    %17 = vsyncpa [#allocation4], 0
    // Predicated region
    $region2: #{forward.1} parent=1 // pred_check
      _
    $region3: #{forward.1} parent=1 // pred_check_branch
      %19 = sbr.rel (0) target = $region5
    $region4: #{forward.1} parent=1 // pred_region
      _
    $region5: #{forward.1} parent=1 // pred_fallthru
      _
    // Predicated region
    $region6: #{forward.1} parent=1 // pred_check
      _
    $region7: #{forward.1} parent=1 // pred_check_branch
      %21 = sbr.rel (0) target = $region9
    $region8: #{forward.1} parent=1 // pred_region
      _
    $region9: #{forward.1} parent=1 // pred_fallthru
      _
    // Predicated region
    $region10: #{forward.1} parent=1 // pred_check
      _
    $region11: #{forward.1} parent=1 // pred_check_branch
      %23 = sbr.rel (0) target = $region13
    $region12: #{forward.1} parent=1 // pred_region
      _
    $region13: #{forward.1} parent=1 // pred_fallthru
      _
    // Predicated region
    $region14: #{forward.1} parent=1 // pred_check
      _
    $region15: #{forward.1} parent=1 // pred_check_branch
      %25 = sbr.rel (0) target = $region17
    $region16: #{forward.1} parent=1 // pred_region
      %s27 = ssub.s32 768, 768
      %28 = vsyncadd [#allocation3], %s27
      %s29 = sshll.u32 [#allocation2], 4
      %s30 = int_to_ptr.vmem [resolvable:$true] %s29
      %35 = dma.hbm_to_vmem [thread:$0]  %s3, 768, %s30, [#allocation3], 128, 128, 8
    $region17: #{forward.1} parent=1 // pred_fallthru
      _
    // Predicated region
    $region18: #{forward.1} parent=1 // pred_check
      _
    $region19: #{forward.1} parent=1 // pred_check_branch
      %37 = sbr.rel (0) target = $region21
    $region20: #{forward.1} parent=1 // pred_region
      _
    $region21: #{forward.1} parent=1 // pred_fallthru
      _
    // Predicated region
    $region22: #{forward.1} parent=1 // pred_check
      _
    $region23: #{forward.1} parent=1 // pred_check_branch
      %39 = sbr.rel (0) target = $region25
    $region24: #{forward.1} parent=1 // pred_region
      _
    $region25: #{forward.1} parent=1 // pred_fallthru
      _
    // Predicated region
    $region26: #{forward.1} parent=1 // pred_check
      _
    $region27: #{forward.1} parent=1 // pred_check_branch
      %41 = sbr.rel (0) target = $region29
    $region28: #{forward.1} parent=1 // pred_region
      %s43 = ssub.s32 512, 512
      %44 = vsyncadd [#allocation6], %s43
      %s45 = sshll.u32 [#allocation5], 4
      %s46 = int_to_ptr.vmem [resolvable:$true] %s45
      %51 = dma.hbm_to_vmem [thread:$0]  %s6, 512, %s46, [#allocation6], 128, 128, 8
    $region29: #{forward.1} parent=1 // pred_fallthru
      _
    // Predicated region
    $region30: #{forward.1} parent=1 // pred_check
      _
    $region31: #{forward.1} parent=1 // pred_check_branch
      %53 = sbr.rel (0) target = $region33
    $region32: #{forward.1} parent=1 // pred_region
      _
    $region33: #{forward.1} parent=1 // pred_fallthru
      _
    // Predicated region
    $region34: #{forward.1} parent=1 // pred_check
      _
    $region35: #{forward.1} parent=1 // pred_check_branch
      %55 = sbr.rel (0) target = $region37
    $region36: #{forward.1} parent=1 // pred_region
      %s57 = ssub.s32 512, 512
      %58 = vsyncadd [#allocation6], %s57
      %s59 = sshll.u32 [#allocation7], 4
      %s60 = int_to_ptr.vmem [resolvable:$true] %s59
      %65 = dma.hbm_to_vmem [thread:$0]  %s8, 512, %s60, [#allocation6], 128, 128, 8
    $region37: #{forward.1} parent=1 // pred_fallthru
      _
    // Predicated region
    $region38: #{forward.1} parent=1 // pred_check
      _
    $region39: #{forward.1} parent=1 // pred_check_branch
      %67 = sbr.rel (0) target = $region41
    $region40: #{forward.1} parent=1 // pred_region
      _
    $region41: #{forward.1} parent=1 // pred_fallthru
      _
    // Predicated region
    $region42: #{forward.1} parent=1 // pred_check
      _
    $region43: #{forward.1} parent=1 // pred_check_branch
      %69 = sbr.rel (0) target = $region45
    $region44: #{forward.1} parent=1 // pred_region
      %70 = dma.done [#allocation3], 768
    $region45: #{forward.1} parent=1 // pred_fallthru
      _
    // Predicated region
    $region46: #{forward.1} parent=1 // pred_check
      _
    $region47: #{forward.1} parent=1 // pred_check_branch
      %72 = sbr.rel (0) target = $region49
    $region48: #{forward.1} parent=1 // pred_region
      %73 = dma.done [#allocation6], 512
    $region49: #{forward.1} parent=1 // pred_fallthru
      _
    // Predicated region
    $region50: #{forward.1} parent=1 // pred_check
      _
    $region51: #{forward.1} parent=1 // pred_check_branch
      %75 = sbr.rel (0) target = $region53
    $region52: #{forward.1} parent=1 // pred_region
      %76 = dma.done [#allocation6], 512
    $region53: #{forward.1} parent=1 // pred_fallthru
      _
    %v77 = vld [vmem:[%s0] sm:$0xff]
    %v78 = vld [vmem:[%s0 + $0x8] sm:$0xff]
    %v79 = vld [vmem:[%s0 + $0x10] sm:$0xf]
    %v80 = vld [vmem:[%s0 + $0x18] sm:$0xff]
    %v81 = vld [vmem:[%s0 + $0x20] sm:$0xff]
    %v82 = vld [vmem:[%s0 + $0x28] sm:$0xf]
    %v89 = vcombine.high %v77, %v77
    %v91 = vunpack.c.l.s4 1983009808
    %v92 = vunpack.c.0.s8 %v91
    %v93 = vlaneseq
    %v94 = vshrl.u32 %v93, 7
    %v95 = vsub.s32 %v92, %v94
    %v96 = vrot.slane %v77, %v95
    %v98 = vunpack.c.l.s4 1983009808
    %v99 = vunpack.c.0.s8 %v98
    %v100 = vlaneseq
    %v101 = vshrl.u32 %v100, 7
    %v102 = vsub.s32 %v99, %v101
    %v103 = vrot.slane %v89, %v102
    %v104 = vcombine.high %v96, %v96
    %v105 = vcombine.high %v103, %v103
    %v106 = vcombine.high %v78, %v78
    %v108 = vunpack.c.l.s4 1983009808
    %v109 = vunpack.c.0.s8 %v108
    %v110 = vlaneseq
    %v111 = vshrl.u32 %v110, 7
    %v112 = vsub.s32 %v109, %v111
    %v113 = vrot.slane %v78, %v112
    %v115 = vunpack.c.l.s4 1983009808
    %v116 = vunpack.c.0.s8 %v115
    %v117 = vlaneseq
    %v118 = vshrl.u32 %v117, 7
    %v119 = vsub.s32 %v116, %v118
    %v120 = vrot.slane %v106, %v119
    %v121 = vcombine.high %v113, %v113
    %v122 = vcombine.high %v120, %v120
    %v124 = vunpack.c.l.s4 1983009808
    %v125 = vunpack.c.0.s8 %v124
    %v126 = vlaneseq
    %v127 = vshrl.u32 %v126, 7
    %v128 = vsub.s32 %v125, %v127
    %v129 = vrot.slane %v79, %v128
    %v130 = vcombine.high %v80, %v80
    %v132 = vunpack.c.l.s4 1983009808
    %v133 = vunpack.c.0.s8 %v132
    %v134 = vlaneseq
    %v135 = vshrl.u32 %v134, 7
    %v136 = vsub.s32 %v133, %v135
    %v137 = vrot.slane %v80, %v136
    %v139 = vunpack.c.l.s4 1983009808
    %v140 = vunpack.c.0.s8 %v139
    %v141 = vlaneseq
    %v142 = vshrl.u32 %v141, 7
    %v143 = vsub.s32 %v140, %v142
    %v144 = vrot.slane %v130, %v143
    %v145 = vcombine.high %v137, %v137
    %v146 = vcombine.high %v144, %v144
    %v147 = vcombine.high %v81, %v81
    %v149 = vunpack.c.l.s4 1983009808
    %v150 = vunpack.c.0.s8 %v149
    %v151 = vlaneseq
    %v152 = vshrl.u32 %v151, 7
    %v153 = vsub.s32 %v150, %v152
    %v154 = vrot.slane %v81, %v153
    %v156 = vunpack.c.l.s4 1983009808
    %v157 = vunpack.c.0.s8 %v156
    %v158 = vlaneseq
    %v159 = vshrl.u32 %v158, 7
    %v160 = vsub.s32 %v157, %v159
    %v161 = vrot.slane %v147, %v160
    %v162 = vcombine.high %v154, %v154
    %v163 = vcombine.high %v161, %v161
    %v165 = vunpack.c.l.s4 1983009808
    %v166 = vunpack.c.0.s8 %v165
    %v167 = vlaneseq
    %v168 = vshrl.u32 %v167, 7
    %v169 = vsub.s32 %v166, %v168
    %v170 = vrot.slane %v82, %v169
    %v171 = vld [vmem:[%s1] sm:$0xff]
    %v172 = vld [vmem:[%s1 + $0x8] sm:$0xff]
    %v173 = vcombine.high %v129, %v129
    %v174 = vcombine.high %v170, %v170
    %vm175 = vcmask 1040384
    %vm176 = vcmask 1042434
    %vm177 = vmor %vm175, %vm176
    %vm178 = vcmask 1044484
    %vm179 = vmor %vm177, %vm178
    %vm180 = vcmask 1046534
    %vm181 = vmor %vm179, %vm180
    %v182 = vrot.slane %v96, 7
    %v183 = vrot.slane %v182, 2
    %v184 = vrot.slane %v104, 7
    %v185 = vsel %vm181, %v183, %v184
    %v186 = vrot.slane %v184, 2
    %v187 = vrot.slane %v103, 7
    %v188 = vsel %vm181, %v186, %v187
    %v189 = vrot.slane %v187, 2
    %v190 = vrot.slane %v105, 7
    %v191 = vsel %vm181, %v189, %v190
    %v192 = vrot.slane %v190, 2
    %v193 = vrot.slane %v113, 7
    %v194 = vsel %vm181, %v192, %v193
    %v195 = vrot.slane %v193, 2
    %v196 = vrot.slane %v121, 7
    %v197 = vsel %vm181, %v195, %v196
    %v198 = vrot.slane %v196, 2
    %v199 = vrot.slane %v120, 7
    %v200 = vsel %vm181, %v198, %v199
    %v201 = vrot.slane %v199, 2
    %v202 = vrot.slane %v122, 7
    %v203 = vsel %vm181, %v201, %v202
    %v204 = vrot.slane %v202, 2
    %v205 = vrot.slane %v129, 7
    %v206 = vsel %vm181, %v204, %v205
    %v207 = vrot.slane %v205, 2
    %v208 = vrot.slane %v173, 7
    %v209 = vsel %vm181, %v207, %v208
    %v210 = vrot.slane %v137, 7
    %v211 = vrot.slane %v210, 2
    %v212 = vrot.slane %v145, 7
    %v213 = vsel %vm181, %v211, %v212
    %v214 = vrot.slane %v212, 2
    %v215 = vrot.slane %v144, 7
    %v216 = vsel %vm181, %v214, %v215
    %v217 = vrot.slane %v215, 2
    %v218 = vrot.slane %v146, 7
    %v219 = vsel %vm181, %v217, %v218
    %v220 = vrot.slane %v218, 2
    %v221 = vrot.slane %v154, 7
    %v222 = vsel %vm181, %v220, %v221
    %v223 = vrot.slane %v221, 2
    %v224 = vrot.slane %v162, 7
    %v225 = vsel %vm181, %v223, %v224
    %v226 = vrot.slane %v224, 2
    %v227 = vrot.slane %v161, 7
    %v228 = vsel %vm181, %v226, %v227
    %v229 = vrot.slane %v227, 2
    %v230 = vrot.slane %v163, 7
    %v231 = vsel %vm181, %v229, %v230
    %v232 = vrot.slane %v230, 2
    %v233 = vrot.slane %v170, 7
    %v234 = vsel %vm181, %v232, %v233
    %v235 = vrot.slane %v233, 2
    %v236 = vrot.slane %v174, 7
    %v237 = vsel %vm181, %v235, %v236
    %s238 = scalar_lea.vmem %s1, 16
    %v239 = vld [vmem:[%s238] sm:$0xff]
    %v240 = vld [vmem:[%s238 + $0x8] sm:$0xff]
    %v241 = vcombine.low %v185, %v188
    %v242 = vcombine.low %v191, %v194
    %v244 = vunpack.c.l.s4 1983009808
    %v245 = vunpack.c.0.s8 %v244
    %v246 = vlaneseq
    %v247 = vshrl.u32 %v246, 7
    %v248 = vsub.s32 %v245, %v247
    %v249 = vrot.slane %v241, %v248
    %v251 = vunpack.c.l.s4 1983009808
    %v252 = vunpack.c.0.s8 %v251
    %v253 = vlaneseq
    %v254 = vshrl.u32 %v253, 7
    %v255 = vsub.s32 %v252, %v254
    %v256 = vrot.slane %v242, %v255
    %v257 = vcombine.low %v249, %v256
    %v258 = vcombine.low %v197, %v200
    %v259 = vcombine.low %v203, %v206
    %v261 = vunpack.c.l.s4 1983009808
    %v262 = vunpack.c.0.s8 %v261
    %v263 = vlaneseq
    %v264 = vshrl.u32 %v263, 7
    %v265 = vsub.s32 %v262, %v264
    %v266 = vrot.slane %v258, %v265
    %v268 = vunpack.c.l.s4 1983009808
    %v269 = vunpack.c.0.s8 %v268
    %v270 = vlaneseq
    %v271 = vshrl.u32 %v270, 7
    %v272 = vsub.s32 %v269, %v271
    %v273 = vrot.slane %v259, %v272
    %v274 = vcombine.low %v266, %v273
    %v275 = vcombine.low %v209, %v213
    %v276 = vcombine.low %v216, %v219
    %v278 = vunpack.c.l.s4 1983009808
    %v279 = vunpack.c.0.s8 %v278
    %v280 = vlaneseq
    %v281 = vshrl.u32 %v280, 7
    %v282 = vsub.s32 %v279, %v281
    %v283 = vrot.slane %v275, %v282
    %v285 = vunpack.c.l.s4 1983009808
    %v286 = vunpack.c.0.s8 %v285
    %v287 = vlaneseq
    %v288 = vshrl.u32 %v287, 7
    %v289 = vsub.s32 %v286, %v288
    %v290 = vrot.slane %v276, %v289
    %v291 = vcombine.low %v283, %v290
    %v292 = vcombine.low %v222, %v225
    %v293 = vcombine.low %v228, %v231
    %v295 = vunpack.c.l.s4 1983009808
    %v296 = vunpack.c.0.s8 %v295
    %v297 = vlaneseq
    %v298 = vshrl.u32 %v297, 7
    %v299 = vsub.s32 %v296, %v298
    %v300 = vrot.slane %v292, %v299
    %v302 = vunpack.c.l.s4 1983009808
    %v303 = vunpack.c.0.s8 %v302
    %v304 = vlaneseq
    %v305 = vshrl.u32 %v304, 7
    %v306 = vsub.s32 %v303, %v305
    %v307 = vrot.slane %v293, %v306
    %v308 = vcombine.low %v300, %v307
    %v309 = vcombine.low %v234, %v237
    %v311 = vunpack.c.l.s4 1983009808
    %v312 = vunpack.c.0.s8 %v311
    %v313 = vlaneseq
    %v314 = vshrl.u32 %v313, 7
    %v315 = vsub.s32 %v312, %v314
    %v316 = vrot.slane %v309, %v315
    %vm317 = vcmask 130048
    %v318 = vsel %vm317, %v257, 0
    %v320 = vsel %vm317, %v274, 0
    %v322 = vsel %vm317, %v291, 0
    %v324 = vsel %vm317, %v308, 0
    %v326 = vsel %vm317, %v316, 0
    %328 = vmatprep.subr.mxu0 0.0
    %329 = vmatpush1.msra.mxu0 %v239
    %330 = vmatprep.subr.mxu0 0.0
    %331 = vmatpush1.msra.mxu0 %v240
    %332 = vmatprep.subr.mxu0 0.0
    %333 = vmatpush1.msra.mxu0 0.0
    %334 = vmatprep.subr.mxu0 0.0
    %335 = vmatpush1.msra.mxu0 0.0
    %336 = vmatprep.subr.mxu0 0.0
    %337 = vmatpush1.msra.mxu0 0.0
    %338 = vmatprep.subr.mxu0 0.0
    %339 = vmatpush1.msra.mxu0 0.0
    %340 = vmatprep.subr.mxu0 0.0
    %341 = vmatpush1.msra.mxu0 0.0
    %342 = vmatprep.subr.mxu0 0.0
    %343 = vmatpush1.msra.mxu0 0.0
    %344 = vmatprep.subr.mxu0 0.0
    %345 = vmatpush1.msra.mxu0 0.0
    %346 = vmatprep.subr.mxu0 0.0
    %347 = vmatpush1.msra.mxu0 0.0
    %348 = vmatprep.subr.mxu0 0.0
    %349 = vmatpush1.msra.mxu0 0.0
    %350 = vmatprep.subr.mxu0 0.0
    %351 = vmatpush1.msra.mxu0 0.0
    %352 = vmatprep.subr.mxu0 0.0
    %353 = vmatpush1.msra.mxu0 0.0
    %354 = vmatprep.subr.mxu0 0.0
    %355 = vmatpush1.msra.mxu0 0.0
    %356 = vmatprep.subr.mxu0 0.0
    %357 = vmatpush1.msra.mxu0 0.0
    %358 = vmatprep.subr.mxu0 0.0
    %359 = vmatpush1.msra.mxu0 0.0
    %360 = vmatprep.subr.mxu0 0.0
    %361 = vmatpush1.msra.mxu0 0.0
    %362 = vmatprep.subr.mxu0 0.0
    %363 = vmatpush1.msra.mxu0 0.0
    %364 = vmatprep.subr.mxu0 0.0
    %365 = vmatpush1.msra.mxu0 0.0
    %366 = vmatprep.subr.mxu0 0.0
    %367 = vmatpush1.msra.mxu0 0.0
    %368 = vmatprep.subr.mxu0 0.0
    %369 = vmatpush1.msra.mxu0 0.0
    %370 = vmatprep.subr.mxu0 0.0
    %371 = vmatpush1.msra.mxu0 0.0
    %372 = vmatprep.subr.mxu0 0.0
    %373 = vmatpush1.msra.mxu0 0.0
    %374 = vmatprep.subr.mxu0 0.0
    %375 = vmatpush1.msra.mxu0 0.0
    %376 = vmatprep.subr.mxu0 0.0
    %377 = vmatpush1.msra.mxu0 0.0
    %378 = vmatprep.subr.mxu0 0.0
    %379 = vmatpush1.msra.mxu0 0.0
    %380 = vmatprep.subr.mxu0 0.0
    %381 = vmatpush1.msra.mxu0 0.0
    %382 = vmatprep.subr.mxu0 0.0
    %383 = vmatpush1.msra.mxu0 0.0
    %384 = vmatprep.subr.mxu0 0.0
    %385 = vmatpush1.msra.mxu0 0.0
    %386 = vmatprep.subr.mxu0 0.0
    %387 = vmatpush1.msra.mxu0 0.0
    %388 = vmatprep.subr.mxu0 0.0
    %389 = vmatpush1.msra.mxu0 0.0
    %390 = vmatprep.subr.mxu0 0.0
    %391 = vmatpush1.msra.mxu0 0.0
    %392 = vmatprep.mubr.f32.mxu0 0.0
    %393 = vmatmul.mubr.f32.gmra.mrb[0].mxu0 %v318
    %v394 = vpop.f32.mrb[0].mxu0
    %v395 = vadd.f32 0.0, %v394
    %v396 = vpop.f32.mrb[0].mxu0
    %397 = vmatprep.mubr.f32.mxu0 0.0
    %398 = vmatmul.mubr.f32.gmra.mrb[0].mxu0 %v320
    %v399 = vpop.f32.mrb[0].mxu0
    %v400 = vadd.f32 0.0, %v399
    %v401 = vpop.f32.mrb[0].mxu0
    %402 = vmatprep.mubr.f32.mxu0 0.0
    %403 = vmatmul.mubr.f32.gmra.mrb[0].mxu0 %v322
    %v404 = vpop.f32.mrb[0].mxu0
    %v405 = vadd.f32 0.0, %v404
    %v406 = vpop.f32.mrb[0].mxu0
    %407 = vmatprep.mubr.f32.mxu0 0.0
    %408 = vmatmul.mubr.f32.gmra.mrb[0].mxu0 %v324
    %v409 = vpop.f32.mrb[0].mxu0
    %v410 = vadd.f32 0.0, %v409
    %v411 = vpop.f32.mrb[0].mxu0
    %412 = vmatprep.mubr.f32.mxu0 0.0
    %413 = vmatmul.mubr.f32.gmra.mrb[0].mxu0 %v326
    %v414 = vpop.f32.mrb[0].mxu0
    %v415 = vadd.f32 0.0, %v414
    %v416 = vpop.f32.mrb[0].mxu0
    %417 = vdwg.mxu0
    %v418 = vcombine.low %v96, %v104
    %v419 = vcombine.low %v103, %v105
    %v421 = vunpack.c.l.s4 1983009808
    %v422 = vunpack.c.0.s8 %v421
    %v423 = vlaneseq
    %v424 = vshrl.u32 %v423, 7
    %v425 = vsub.s32 %v422, %v424
    %v426 = vrot.slane %v418, %v425
    %v428 = vunpack.c.l.s4 1983009808
    %v429 = vunpack.c.0.s8 %v428
    %v430 = vlaneseq
    %v431 = vshrl.u32 %v430, 7
    %v432 = vsub.s32 %v429, %v431
    %v433 = vrot.slane %v419, %v432
    %v434 = vcombine.low %v426, %v433
    %v435 = vcombine.low %v113, %v121
    %v436 = vcombine.low %v120, %v122
    %v438 = vunpack.c.l.s4 1983009808
    %v439 = vunpack.c.0.s8 %v438
    %v440 = vlaneseq
    %v441 = vshrl.u32 %v440, 7
    %v442 = vsub.s32 %v439, %v441
    %v443 = vrot.slane %v435, %v442
    %v445 = vunpack.c.l.s4 1983009808
    %v446 = vunpack.c.0.s8 %v445
    %v447 = vlaneseq
    %v448 = vshrl.u32 %v447, 7
    %v449 = vsub.s32 %v446, %v448
    %v450 = vrot.slane %v436, %v449
    %v451 = vcombine.low %v443, %v450
    %v452 = vcombine.low %v129, %v137
    %v453 = vcombine.low %v145, %v144
    %v455 = vunpack.c.l.s4 1983009808
    %v456 = vunpack.c.0.s8 %v455
    %v457 = vlaneseq
    %v458 = vshrl.u32 %v457, 7
    %v459 = vsub.s32 %v456, %v458
    %v460 = vrot.slane %v452, %v459
    %v462 = vunpack.c.l.s4 1983009808
    %v463 = vunpack.c.0.s8 %v462
    %v464 = vlaneseq
    %v465 = vshrl.u32 %v464, 7
    %v466 = vsub.s32 %v463, %v465
    %v467 = vrot.slane %v453, %v466
    %v468 = vcombine.low %v460, %v467
    %v469 = vcombine.low %v146, %v154
    %v470 = vcombine.low %v162, %v161
    %v472 = vunpack.c.l.s4 1983009808
    %v473 = vunpack.c.0.s8 %v472
    %v474 = vlaneseq
    %v475 = vshrl.u32 %v474, 7
    %v476 = vsub.s32 %v473, %v475
    %v477 = vrot.slane %v469, %v476
    %v479 = vunpack.c.l.s4 1983009808
    %v480 = vunpack.c.0.s8 %v479
    %v481 = vlaneseq
    %v482 = vshrl.u32 %v481, 7
    %v483 = vsub.s32 %v480, %v482
    %v484 = vrot.slane %v470, %v483
    %v485 = vcombine.low %v477, %v484
    %v486 = vcombine.low %v163, %v170
    %v488 = vunpack.c.l.s4 1983009808
    %v489 = vunpack.c.0.s8 %v488
    %v490 = vlaneseq
    %v491 = vshrl.u32 %v490, 7
    %v492 = vsub.s32 %v489, %v491
    %v493 = vrot.slane %v486, %v492
    %v494 = vsel %vm317, %v434, 0
    %v496 = vsel %vm317, %v451, 0
    %v498 = vsel %vm317, %v468, 0
    %v500 = vsel %vm317, %v485, 0
    %v502 = vsel %vm317, %v493, 0
    %504 = vmatprep.subr.mxu0 0.0
    %505 = vmatpush1.msra.mxu0 %v171
    %506 = vmatprep.subr.mxu0 0.0
    %507 = vmatpush1.msra.mxu0 %v172
    %508 = vmatprep.subr.mxu0 0.0
    %509 = vmatpush1.msra.mxu0 0.0
    %510 = vmatprep.subr.mxu0 0.0
    %511 = vmatpush1.msra.mxu0 0.0
    %512 = vmatprep.subr.mxu0 0.0
    %513 = vmatpush1.msra.mxu0 0.0
    %514 = vmatprep.subr.mxu0 0.0
    %515 = vmatpush1.msra.mxu0 0.0
    %516 = vmatprep.subr.mxu0 0.0
    %517 = vmatpush1.msra.mxu0 0.0
    %518 = vmatprep.subr.mxu0 0.0
    %519 = vmatpush1.msra.mxu0 0.0
    %520 = vmatprep.subr.mxu0 0.0
    %521 = vmatpush1.msra.mxu0 0.0
    %522 = vmatprep.subr.mxu0 0.0
    %523 = vmatpush1.msra.mxu0 0.0
    %524 = vmatprep.subr.mxu0 0.0
    %525 = vmatpush1.msra.mxu0 0.0
    %526 = vmatprep.subr.mxu0 0.0
    %527 = vmatpush1.msra.mxu0 0.0
    %528 = vmatprep.subr.mxu0 0.0
    %529 = vmatpush1.msra.mxu0 0.0
    %530 = vmatprep.subr.mxu0 0.0
    %531 = vmatpush1.msra.mxu0 0.0
    %532 = vmatprep.subr.mxu0 0.0
    %533 = vmatpush1.msra.mxu0 0.0
    %534 = vmatprep.subr.mxu0 0.0
    %535 = vmatpush1.msra.mxu0 0.0
    %536 = vmatprep.subr.mxu0 0.0
    %537 = vmatpush1.msra.mxu0 0.0
    %538 = vmatprep.subr.mxu0 0.0
    %539 = vmatpush1.msra.mxu0 0.0
    %540 = vmatprep.subr.mxu0 0.0
    %541 = vmatpush1.msra.mxu0 0.0
    %542 = vmatprep.subr.mxu0 0.0
    %543 = vmatpush1.msra.mxu0 0.0
    %544 = vmatprep.subr.mxu0 0.0
    %545 = vmatpush1.msra.mxu0 0.0
    %546 = vmatprep.subr.mxu0 0.0
    %547 = vmatpush1.msra.mxu0 0.0
    %548 = vmatprep.subr.mxu0 0.0
    %549 = vmatpush1.msra.mxu0 0.0
    %550 = vmatprep.subr.mxu0 0.0
    %551 = vmatpush1.msra.mxu0 0.0
    %552 = vmatprep.subr.mxu0 0.0
    %553 = vmatpush1.msra.mxu0 0.0
    %554 = vmatprep.subr.mxu0 0.0
    %555 = vmatpush1.msra.mxu0 0.0
    %556 = vmatprep.subr.mxu0 0.0
    %557 = vmatpush1.msra.mxu0 0.0
    %558 = vmatprep.subr.mxu0 0.0
    %559 = vmatpush1.msra.mxu0 0.0
    %560 = vmatprep.subr.mxu0 0.0
    %561 = vmatpush1.msra.mxu0 0.0
    %562 = vmatprep.subr.mxu0 0.0
    %563 = vmatpush1.msra.mxu0 0.0
    %564 = vmatprep.subr.mxu0 0.0
    %565 = vmatpush1.msra.mxu0 0.0
    %566 = vmatprep.subr.mxu0 0.0
    %567 = vmatpush1.msra.mxu0 0.0
    %568 = vmatprep.mubr.f32.mxu0 0.0
    %569 = vmatmul.mubr.f32.gmra.mrb[0].mxu0 %v494
    %v570 = vpop.f32.mrb[0].mxu0
    %v571 = vadd.f32 %v395, %v570
    %v572 = vpop.f32.mrb[0].mxu0
    %573 = vmatprep.mubr.f32.mxu0 0.0
    %574 = vmatmul.mubr.f32.gmra.mrb[0].mxu0 %v496
    %v575 = vpop.f32.mrb[0].mxu0
    %v576 = vadd.f32 %v400, %v575
    %v577 = vpop.f32.mrb[0].mxu0
    %578 = vmatprep.mubr.f32.mxu0 0.0
    %579 = vmatmul.mubr.f32.gmra.mrb[0].mxu0 %v498
    %v580 = vpop.f32.mrb[0].mxu0
    %v581 = vadd.f32 %v405, %v580
    %v582 = vpop.f32.mrb[0].mxu0
    %583 = vmatprep.mubr.f32.mxu0 0.0
    %584 = vmatmul.mubr.f32.gmra.mrb[0].mxu0 %v500
    %v585 = vpop.f32.mrb[0].mxu0
    %v586 = vadd.f32 %v410, %v585
    %v587 = vpop.f32.mrb[0].mxu0
    %588 = vmatprep.mubr.f32.mxu0 0.0
    %589 = vmatmul.mubr.f32.gmra.mrb[0].mxu0 %v502
    %v590 = vpop.f32.mrb[0].mxu0
    %v591 = vadd.f32 %v415, %v590
    %v592 = vpop.f32.mrb[0].mxu0
    %593 = vdwg.mxu0
    %s594 = scalar_lea.vmem %s1, 32
    %v595 = vld [vmem:[%s594] sm:$0xff]
    %v596 = vld [vmem:[%s594 + $0x8] sm:$0xff]
    %v597 = vcombine.low %v104, %v103
    %v598 = vcombine.low %v105, %v113
    %v600 = vunpack.c.l.s4 1983009808
    %v601 = vunpack.c.0.s8 %v600
    %v602 = vlaneseq
    %v603 = vshrl.u32 %v602, 7
    %v604 = vsub.s32 %v601, %v603
    %v605 = vrot.slane %v597, %v604
    %v607 = vunpack.c.l.s4 1983009808
    %v608 = vunpack.c.0.s8 %v607
    %v609 = vlaneseq
    %v610 = vshrl.u32 %v609, 7
    %v611 = vsub.s32 %v608, %v610
    %v612 = vrot.slane %v598, %v611
    %v613 = vcombine.low %v605, %v612
    %v614 = vcombine.low %v121, %v120
    %v615 = vcombine.low %v122, %v129
    %v617 = vunpack.c.l.s4 1983009808
    %v618 = vunpack.c.0.s8 %v617
    %v619 = vlaneseq
    %v620 = vshrl.u32 %v619, 7
    %v621 = vsub.s32 %v618, %v620
    %v622 = vrot.slane %v614, %v621
    %v624 = vunpack.c.l.s4 1983009808
    %v625 = vunpack.c.0.s8 %v624
    %v626 = vlaneseq
    %v627 = vshrl.u32 %v626, 7
    %v628 = vsub.s32 %v625, %v627
    %v629 = vrot.slane %v615, %v628
    %v630 = vcombine.low %v622, %v629
    %v631 = vcombine.low %v173, %v145
    %v632 = vcombine.low %v144, %v146
    %v634 = vunpack.c.l.s4 1983009808
    %v635 = vunpack.c.0.s8 %v634
    %v636 = vlaneseq
    %v637 = vshrl.u32 %v636, 7
    %v638 = vsub.s32 %v635, %v637
    %v639 = vrot.slane %v631, %v638
    %v641 = vunpack.c.l.s4 1983009808
    %v642 = vunpack.c.0.s8 %v641
    %v643 = vlaneseq
    %v644 = vshrl.u32 %v643, 7
    %v645 = vsub.s32 %v642, %v644
    %v646 = vrot.slane %v632, %v645
    %v647 = vcombine.low %v639, %v646
    %v648 = vcombine.low %v154, %v162
    %v649 = vcombine.low %v161, %v163
    %v651 = vunpack.c.l.s4 1983009808
    %v652 = vunpack.c.0.s8 %v651
    %v653 = vlaneseq
    %v654 = vshrl.u32 %v653, 7
    %v655 = vsub.s32 %v652, %v654
    %v656 = vrot.slane %v648, %v655
    %v658 = vunpack.c.l.s4 1983009808
    %v659 = vunpack.c.0.s8 %v658
    %v660 = vlaneseq
    %v661 = vshrl.u32 %v660, 7
    %v662 = vsub.s32 %v659, %v661
    %v663 = vrot.slane %v649, %v662
    %v664 = vcombine.low %v656, %v663
    %v665 = vcombine.low %v170, %v174
    %v667 = vunpack.c.l.s4 1983009808
    %v668 = vunpack.c.0.s8 %v667
    %v669 = vlaneseq
    %v670 = vshrl.u32 %v669, 7
    %v671 = vsub.s32 %v668, %v670
    %v672 = vrot.slane %v665, %v671
    %v673 = vsel %vm317, %v613, 0
    %v675 = vsel %vm317, %v630, 0
    %v677 = vsel %vm317, %v647, 0
    %v679 = vsel %vm317, %v664, 0
    %v681 = vsel %vm317, %v672, 0
    %683 = vmatprep.subr.mxu0 0.0
    %684 = vmatpush1.msra.mxu0 %v595
    %685 = vmatprep.subr.mxu0 0.0
    %686 = vmatpush1.msra.mxu0 %v596
    %687 = vmatprep.subr.mxu0 0.0
    %688 = vmatpush1.msra.mxu0 0.0
    %689 = vmatprep.subr.mxu0 0.0
    %690 = vmatpush1.msra.mxu0 0.0
    %691 = vmatprep.subr.mxu0 0.0
    %692 = vmatpush1.msra.mxu0 0.0
    %693 = vmatprep.subr.mxu0 0.0
    %694 = vmatpush1.msra.mxu0 0.0
    %695 = vmatprep.subr.mxu0 0.0
    %696 = vmatpush1.msra.mxu0 0.0
    %697 = vmatprep.subr.mxu0 0.0
    %698 = vmatpush1.msra.mxu0 0.0
    %699 = vmatprep.subr.mxu0 0.0
    %700 = vmatpush1.msra.mxu0 0.0
    %701 = vmatprep.subr.mxu0 0.0
    %702 = vmatpush1.msra.mxu0 0.0
    %703 = vmatprep.subr.mxu0 0.0
    %704 = vmatpush1.msra.mxu0 0.0
    %705 = vmatprep.subr.mxu0 0.0
    %706 = vmatpush1.msra.mxu0 0.0
    %707 = vmatprep.subr.mxu0 0.0
    %708 = vmatpush1.msra.mxu0 0.0
    %709 = vmatprep.subr.mxu0 0.0
    %710 = vmatpush1.msra.mxu0 0.0
    %711 = vmatprep.subr.mxu0 0.0
    %712 = vmatpush1.msra.mxu0 0.0
    %713 = vmatprep.subr.mxu0 0.0
    %714 = vmatpush1.msra.mxu0 0.0
    %715 = vmatprep.subr.mxu0 0.0
    %716 = vmatpush1.msra.mxu0 0.0
    %717 = vmatprep.subr.mxu0 0.0
    %718 = vmatpush1.msra.mxu0 0.0
    %719 = vmatprep.subr.mxu0 0.0
    %720 = vmatpush1.msra.mxu0 0.0
    %721 = vmatprep.subr.mxu0 0.0
    %722 = vmatpush1.msra.mxu0 0.0
    %723 = vmatprep.subr.mxu0 0.0
    %724 = vmatpush1.msra.mxu0 0.0
    %725 = vmatprep.subr.mxu0 0.0
    %726 = vmatpush1.msra.mxu0 0.0
    %727 = vmatprep.subr.mxu0 0.0
    %728 = vmatpush1.msra.mxu0 0.0
    %729 = vmatprep.subr.mxu0 0.0
    %730 = vmatpush1.msra.mxu0 0.0
    %731 = vmatprep.subr.mxu0 0.0
    %732 = vmatpush1.msra.mxu0 0.0
    %733 = vmatprep.subr.mxu0 0.0
    %734 = vmatpush1.msra.mxu0 0.0
    %735 = vmatprep.subr.mxu0 0.0
    %736 = vmatpush1.msra.mxu0 0.0
    %737 = vmatprep.subr.mxu0 0.0
    %738 = vmatpush1.msra.mxu0 0.0
    %739 = vmatprep.subr.mxu0 0.0
    %740 = vmatpush1.msra.mxu0 0.0
    %741 = vmatprep.subr.mxu0 0.0
    %742 = vmatpush1.msra.mxu0 0.0
    %743 = vmatprep.subr.mxu0 0.0
    %744 = vmatpush1.msra.mxu0 0.0
    %745 = vmatprep.subr.mxu0 0.0
    %746 = vmatpush1.msra.mxu0 0.0
    %747 = vmatprep.mubr.f32.mxu0 0.0
    %748 = vmatmul.mubr.f32.gmra.mrb[0].mxu0 %v673
    %v749 = vpop.f32.mrb[0].mxu0
    %v750 = vadd.f32 0.0, %v749
    %v751 = vpop.f32.mrb[0].mxu0
    %752 = vmatprep.mubr.f32.mxu0 0.0
    %753 = vmatmul.mubr.f32.gmra.mrb[0].mxu0 %v675
    %v754 = vpop.f32.mrb[0].mxu0
    %v755 = vadd.f32 0.0, %v754
    %v756 = vpop.f32.mrb[0].mxu0
    %757 = vmatprep.mubr.f32.mxu0 0.0
    %758 = vmatmul.mubr.f32.gmra.mrb[0].mxu0 %v677
    %v759 = vpop.f32.mrb[0].mxu0
    %v760 = vadd.f32 0.0, %v759
    %v761 = vpop.f32.mrb[0].mxu0
    %762 = vmatprep.mubr.f32.mxu0 0.0
    %763 = vmatmul.mubr.f32.gmra.mrb[0].mxu0 %v679
    %v764 = vpop.f32.mrb[0].mxu0
    %v765 = vadd.f32 0.0, %v764
    %v766 = vpop.f32.mrb[0].mxu0
    %767 = vmatprep.mubr.f32.mxu0 0.0
    %768 = vmatmul.mubr.f32.gmra.mrb[0].mxu0 %v681
    %v769 = vpop.f32.mrb[0].mxu0
    %v770 = vadd.f32 0.0, %v769
    %v771 = vpop.f32.mrb[0].mxu0
    %772 = vdwg.mxu0
    %v773 = vadd.f32 %v571, %v750
    %v774 = vadd.f32 %v576, %v755
    %v775 = vadd.f32 %v581, %v760
    %v776 = vadd.f32 %v586, %v765
    %v777 = vadd.f32 %v591, %v770
    %v778 = vld [vmem:[%s2] sm:$0x1]
    %v780 = vlaneseq
    %v781 = vshrl.u32 %v780, 7
    %v782 = vsub.s32 0, %v781
    %v783 = vrot.slane %v778, %v782
    %v785 = vadd.f32 %v773, %v783
    %v786 = vadd.f32 %v774, %v783
    %v787 = vadd.f32 %v775, %v783
    %v788 = vadd.f32 %v776, %v783
    %v789 = vadd.f32 %v777, %v783
    %v795 = vcombine.high %v785, %v785
    %v797 = vunpack.c.l.s4 1983009808
    %v798 = vunpack.c.0.s8 %v797
    %v799 = vlaneseq
    %v800 = vshrl.u32 %v799, 7
    %v801 = vsub.s32 %v798, %v800
    %v802 = vrot.slane %v785, %v801
    %v804 = vunpack.c.l.s4 1983009808
    %v805 = vunpack.c.0.s8 %v804
    %v806 = vlaneseq
    %v807 = vshrl.u32 %v806, 7
    %v808 = vsub.s32 %v805, %v807
    %v809 = vrot.slane %v795, %v808
    %v810 = vcombine.high %v802, %v802
    %v811 = vcombine.high %v809, %v809
    %v812 = vcombine.high %v786, %v786
    %v814 = vunpack.c.l.s4 1983009808
    %v815 = vunpack.c.0.s8 %v814
    %v816 = vlaneseq
    %v817 = vshrl.u32 %v816, 7
    %v818 = vsub.s32 %v815, %v817
    %v819 = vrot.slane %v786, %v818
    %v821 = vunpack.c.l.s4 1983009808
    %v822 = vunpack.c.0.s8 %v821
    %v823 = vlaneseq
    %v824 = vshrl.u32 %v823, 7
    %v825 = vsub.s32 %v822, %v824
    %v826 = vrot.slane %v812, %v825
    %v827 = vcombine.high %v819, %v819
    %v828 = vcombine.high %v826, %v826
    %v829 = vcombine.high %v787, %v787
    %v831 = vunpack.c.l.s4 1983009808
    %v832 = vunpack.c.0.s8 %v831
    %v833 = vlaneseq
    %v834 = vshrl.u32 %v833, 7
    %v835 = vsub.s32 %v832, %v834
    %v836 = vrot.slane %v787, %v835
    %v838 = vunpack.c.l.s4 1983009808
    %v839 = vunpack.c.0.s8 %v838
    %v840 = vlaneseq
    %v841 = vshrl.u32 %v840, 7
    %v842 = vsub.s32 %v839, %v841
    %v843 = vrot.slane %v829, %v842
    %v844 = vcombine.high %v836, %v836
    %v845 = vcombine.high %v843, %v843
    %v846 = vcombine.high %v788, %v788
    %v848 = vunpack.c.l.s4 1983009808
    %v849 = vunpack.c.0.s8 %v848
    %v850 = vlaneseq
    %v851 = vshrl.u32 %v850, 7
    %v852 = vsub.s32 %v849, %v851
    %v853 = vrot.slane %v788, %v852
    %v855 = vunpack.c.l.s4 1983009808
    %v856 = vunpack.c.0.s8 %v855
    %v857 = vlaneseq
    %v858 = vshrl.u32 %v857, 7
    %v859 = vsub.s32 %v856, %v858
    %v860 = vrot.slane %v846, %v859
    %v861 = vcombine.high %v853, %v853
    %v862 = vcombine.high %v860, %v860
    %v864 = vunpack.c.l.s4 1983009808
    %v865 = vunpack.c.0.s8 %v864
    %v866 = vlaneseq
    %v867 = vshrl.u32 %v866, 7
    %v868 = vsub.s32 %v865, %v867
    %v869 = vrot.slane %v789, %v868
    %v870 = vcombine.high %v869, %v869
    %v889 = vrot.slane %v802, 7
    %v890 = vrot.slane %v889, 2
    %v891 = vrot.slane %v810, 7
    %v892 = vrot.slane %v891, 2
    %v893 = vrot.slane %v809, 7
    %v894 = vrot.slane %v893, 2
    %v895 = vrot.slane %v811, 7
    %v896 = vrot.slane %v895, 2
    %v897 = vrot.slane %v819, 7
    %v898 = vrot.slane %v897, 2
    %v899 = vrot.slane %v827, 7
    %v900 = vrot.slane %v899, 2
    %v901 = vrot.slane %v826, 7
    %v902 = vrot.slane %v901, 2
    %v903 = vrot.slane %v828, 7
    %v904 = vrot.slane %v903, 2
    %v905 = vrot.slane %v836, 7
    %v906 = vrot.slane %v905, 2
    %v907 = vrot.slane %v844, 7
    %v908 = vrot.slane %v907, 2
    %v909 = vrot.slane %v843, 7
    %v910 = vrot.slane %v909, 2
    %v911 = vrot.slane %v845, 7
    %v912 = vrot.slane %v911, 2
    %v913 = vrot.slane %v853, 7
    %v914 = vrot.slane %v913, 2
    %v915 = vrot.slane %v861, 7
    %v916 = vrot.slane %v915, 2
    %v917 = vrot.slane %v860, 7
    %v918 = vrot.slane %v917, 2
    %v919 = vrot.slane %v862, 7
    %v920 = vrot.slane %v919, 2
    %v921 = vrot.slane %v869, 7
    %v922 = vrot.slane %v921, 2
    %v923 = vrot.slane %v870, 7
    %v924 = vrot.slane %v923, 2
    %v943 = vmax.f32 %v802, %v890
    %v944 = vmax.f32 %v810, %v892
    %v945 = vmax.f32 %v809, %v894
    %v946 = vmax.f32 %v811, %v896
    %v947 = vmax.f32 %v819, %v898
    %v948 = vmax.f32 %v827, %v900
    %v949 = vmax.f32 %v826, %v902
    %v950 = vmax.f32 %v828, %v904
    %v951 = vmax.f32 %v836, %v906
    %v952 = vmax.f32 %v844, %v908
    %v953 = vmax.f32 %v843, %v910
    %v954 = vmax.f32 %v845, %v912
    %v955 = vmax.f32 %v853, %v914
    %v956 = vmax.f32 %v861, %v916
    %v957 = vmax.f32 %v860, %v918
    %v958 = vmax.f32 %v862, %v920
    %v959 = vmax.f32 %v869, %v922
    %v960 = vmax.f32 %v870, %v924
    %v961 = vmax.f32 %v943, 0.0
    %v962 = vmax.f32 %v944, 0.0
    %v963 = vmax.f32 %v945, 0.0
    %v964 = vmax.f32 %v946, 0.0
    %v965 = vmax.f32 %v947, 0.0
    %v966 = vmax.f32 %v948, 0.0
    %v967 = vmax.f32 %v949, 0.0
    %v968 = vmax.f32 %v950, 0.0
    %v969 = vmax.f32 %v951, 0.0
    %v970 = vmax.f32 %v952, 0.0
    %v971 = vmax.f32 %v953, 0.0
    %v972 = vmax.f32 %v954, 0.0
    %v973 = vmax.f32 %v955, 0.0
    %v974 = vmax.f32 %v956, 0.0
    %v975 = vmax.f32 %v957, 0.0
    %v976 = vmax.f32 %v958, 0.0
    %v977 = vmax.f32 %v959, 0.0
    %v978 = vmax.f32 %v960, 0.0
    %v979 = vld [vmem:[#allocation2] sm:$0xff]
    %v980 = vld [vmem:[#allocation2 + $0x8] sm:$0xff]
    %s981 = scalar_lea.vmem [#allocation2], 16
    %v982 = vld [vmem:[%s981] sm:$0xff]
    %v983 = vld [vmem:[%s981 + $0x8] sm:$0xff]
    %v998 = vlaneseq
    %v999 = vshrl.u32 %v998, 7
    %v1000 = vsub.s32 0, %v999
    %v1001 = vrot.slane %v962, %v1000
    %v1002 = vlaneseq
    %v1003 = vshrl.u32 %v1002, 7
    %v1004 = vsub.s32 0, %v1003
    %v1005 = vrot.slane %v963, %v1004
    %v1006 = vlaneseq
    %v1007 = vshrl.u32 %v1006, 7
    %v1008 = vsub.s32 0, %v1007
    %v1009 = vrot.slane %v964, %v1008
    %v1010 = vlaneseq
    %v1011 = vshrl.u32 %v1010, 7
    %v1012 = vsub.s32 0, %v1011
    %v1013 = vrot.slane %v965, %v1012
    %v1014 = vlaneseq
    %v1015 = vshrl.u32 %v1014, 7
    %v1016 = vsub.s32 0, %v1015
    %v1017 = vrot.slane %v966, %v1016
    %v1018 = vlaneseq
    %v1019 = vshrl.u32 %v1018, 7
    %v1020 = vsub.s32 0, %v1019
    %v1021 = vrot.slane %v967, %v1020
    %v1022 = vlaneseq
    %v1023 = vshrl.u32 %v1022, 7
    %v1024 = vsub.s32 0, %v1023
    %v1025 = vrot.slane %v968, %v1024
    %v1026 = vlaneseq
    %v1027 = vshrl.u32 %v1026, 7
    %v1028 = vsub.s32 0, %v1027
    %v1029 = vrot.slane %v971, %v1028
    %v1030 = vlaneseq
    %v1031 = vshrl.u32 %v1030, 7
    %v1032 = vsub.s32 0, %v1031
    %v1033 = vrot.slane %v972, %v1032
    %v1034 = vlaneseq
    %v1035 = vshrl.u32 %v1034, 7
    %v1036 = vsub.s32 0, %v1035
    %v1037 = vrot.slane %v973, %v1036
    %v1038 = vlaneseq
    %v1039 = vshrl.u32 %v1038, 7
    %v1040 = vsub.s32 0, %v1039
    %v1041 = vrot.slane %v974, %v1040
    %v1042 = vlaneseq
    %v1043 = vshrl.u32 %v1042, 7
    %v1044 = vsub.s32 0, %v1043
    %v1045 = vrot.slane %v975, %v1044
    %v1046 = vlaneseq
    %v1047 = vshrl.u32 %v1046, 7
    %v1048 = vsub.s32 0, %v1047
    %v1049 = vrot.slane %v976, %v1048
    %v1050 = vlaneseq
    %v1051 = vshrl.u32 %v1050, 7
    %v1052 = vsub.s32 0, %v1051
    %v1053 = vrot.slane %v977, %v1052
    %vm1054 = vcmask 1041409
    %v1055 = vsel %vm1054, %v1005, %v1001
    %v1056 = vsel %vm176, %v1009, %v1055
    %vm1057 = vcmask 1043459
    %v1058 = vsel %vm1057, %v1013, %v1056
    %v1059 = vsel %vm178, %v1017, %v1058
    %vm1060 = vcmask 1045509
    %v1061 = vsel %vm1060, %v1021, %v1059
    %v1062 = vsel %vm180, %v1025, %v1061
    %vm1063 = vcmask 1047559
    %v1064 = vsel %vm1063, %v1029, %v1062
    %v1065 = vsel %vm1054, %v1037, %v1033
    %v1066 = vsel %vm176, %v1041, %v1065
    %v1067 = vsel %vm1057, %v1045, %v1066
    %v1068 = vsel %vm178, %v1049, %v1067
    %v1069 = vsel %vm1060, %v1053, %v1068
    %v1070 = vsel %vm317, %v1064, 0
    %v1072 = vsel %vm317, %v1069, 0
    %1074 = vmatprep.subr.mxu0 0.0
    %1075 = vmatpush1.msra.mxu0 %v982
    %1076 = vmatprep.subr.mxu0 0.0
    %1077 = vmatpush1.msra.mxu0 %v983
    %1078 = vmatprep.subr.mxu0 0.0
    %1079 = vmatpush1.msra.mxu0 0.0
    %1080 = vmatprep.subr.mxu0 0.0
    %1081 = vmatpush1.msra.mxu0 0.0
    %1082 = vmatprep.subr.mxu0 0.0
    %1083 = vmatpush1.msra.mxu0 0.0
    %1084 = vmatprep.subr.mxu0 0.0
    %1085 = vmatpush1.msra.mxu0 0.0
    %1086 = vmatprep.subr.mxu0 0.0
    %1087 = vmatpush1.msra.mxu0 0.0
    %1088 = vmatprep.subr.mxu0 0.0
    %1089 = vmatpush1.msra.mxu0 0.0
    %1090 = vmatprep.subr.mxu0 0.0
    %1091 = vmatpush1.msra.mxu0 0.0
    %1092 = vmatprep.subr.mxu0 0.0
    %1093 = vmatpush1.msra.mxu0 0.0
    %1094 = vmatprep.subr.mxu0 0.0
    %1095 = vmatpush1.msra.mxu0 0.0
    %1096 = vmatprep.subr.mxu0 0.0
    %1097 = vmatpush1.msra.mxu0 0.0
    %1098 = vmatprep.subr.mxu0 0.0
    %1099 = vmatpush1.msra.mxu0 0.0
    %1100 = vmatprep.subr.mxu0 0.0
    %1101 = vmatpush1.msra.mxu0 0.0
    %1102 = vmatprep.subr.mxu0 0.0
    %1103 = vmatpush1.msra.mxu0 0.0
    %1104 = vmatprep.subr.mxu0 0.0
    %1105 = vmatpush1.msra.mxu0 0.0
    %1106 = vmatprep.subr.mxu0 0.0
    %1107 = vmatpush1.msra.mxu0 0.0
    %1108 = vmatprep.subr.mxu0 0.0
    %1109 = vmatpush1.msra.mxu0 0.0
    %1110 = vmatprep.subr.mxu0 0.0
    %1111 = vmatpush1.msra.mxu0 0.0
    %1112 = vmatprep.subr.mxu0 0.0
    %1113 = vmatpush1.msra.mxu0 0.0
    %1114 = vmatprep.subr.mxu0 0.0
    %1115 = vmatpush1.msra.mxu0 0.0
    %1116 = vmatprep.subr.mxu0 0.0
    %1117 = vmatpush1.msra.mxu0 0.0
    %1118 = vmatprep.subr.mxu0 0.0
    %1119 = vmatpush1.msra.mxu0 0.0
    %1120 = vmatprep.subr.mxu0 0.0
    %1121 = vmatpush1.msra.mxu0 0.0
    %1122 = vmatprep.subr.mxu0 0.0
    %1123 = vmatpush1.msra.mxu0 0.0
    %1124 = vmatprep.subr.mxu0 0.0
    %1125 = vmatpush1.msra.mxu0 0.0
    %1126 = vmatprep.subr.mxu0 0.0
    %1127 = vmatpush1.msra.mxu0 0.0
    %1128 = vmatprep.subr.mxu0 0.0
    %1129 = vmatpush1.msra.mxu0 0.0
    %1130 = vmatprep.subr.mxu0 0.0
    %1131 = vmatpush1.msra.mxu0 0.0
    %1132 = vmatprep.subr.mxu0 0.0
    %1133 = vmatpush1.msra.mxu0 0.0
    %1134 = vmatprep.subr.mxu0 0.0
    %1135 = vmatpush1.msra.mxu0 0.0
    %1136 = vmatprep.subr.mxu0 0.0
    %1137 = vmatpush1.msra.mxu0 0.0
    %1138 = vmatprep.mubr.f32.mxu0 0.0
    %1139 = vmatmul.mubr.f32.gmra.mrb[0].mxu0 %v1070
    %v1140 = vpop.f32.mrb[0].mxu0
    %v1141 = vadd.f32 0.0, %v1140
    %v1142 = vpop.f32.mrb[0].mxu0
    %1143 = vmatprep.mubr.f32.mxu0 0.0
    %1144 = vmatmul.mubr.f32.gmra.mrb[0].mxu0 %v1072
    %v1145 = vpop.f32.mrb[0].mxu0
    %v1146 = vadd.f32 0.0, %v1145
    %v1147 = vpop.f32.mrb[0].mxu0
    %1148 = vdwg.mxu0
    %v1151 = vlaneseq
    %v1152 = vshrl.u32 %v1151, 7
    %v1153 = vsub.s32 0, %v1152
    %v1154 = vrot.slane %v961, %v1153
    %v1155 = vlaneseq
    %v1156 = vshrl.u32 %v1155, 7
    %v1157 = vsub.s32 0, %v1156
    %v1158 = vrot.slane %v970, %v1157
    %v1159 = vsel %vm1054, %v1001, %v1154
    %v1160 = vsel %vm176, %v1005, %v1159
    %v1161 = vsel %vm1057, %v1009, %v1160
    %v1162 = vsel %vm178, %v1013, %v1161
    %v1163 = vsel %vm1060, %v1017, %v1162
    %v1164 = vsel %vm180, %v1021, %v1163
    %v1165 = vsel %vm1063, %v1158, %v1164
    %v1166 = vsel %vm1054, %v1033, %v1029
    %v1167 = vsel %vm176, %v1037, %v1166
    %v1168 = vsel %vm1057, %v1041, %v1167
    %v1169 = vsel %vm178, %v1045, %v1168
    %v1170 = vsel %vm1060, %v1049, %v1169
    %v1171 = vsel %vm317, %v1165, 0
    %v1173 = vsel %vm317, %v1170, 0
    %1175 = vmatprep.subr.mxu0 0.0
    %1176 = vmatpush1.msra.mxu0 %v979
    %1177 = vmatprep.subr.mxu0 0.0
    %1178 = vmatpush1.msra.mxu0 %v980
    %1179 = vmatprep.subr.mxu0 0.0
    %1180 = vmatpush1.msra.mxu0 0.0
    %1181 = vmatprep.subr.mxu0 0.0
    %1182 = vmatpush1.msra.mxu0 0.0
    %1183 = vmatprep.subr.mxu0 0.0
    %1184 = vmatpush1.msra.mxu0 0.0
    %1185 = vmatprep.subr.mxu0 0.0
    %1186 = vmatpush1.msra.mxu0 0.0
    %1187 = vmatprep.subr.mxu0 0.0
    %1188 = vmatpush1.msra.mxu0 0.0
    %1189 = vmatprep.subr.mxu0 0.0
    %1190 = vmatpush1.msra.mxu0 0.0
    %1191 = vmatprep.subr.mxu0 0.0
    %1192 = vmatpush1.msra.mxu0 0.0
    %1193 = vmatprep.subr.mxu0 0.0
    %1194 = vmatpush1.msra.mxu0 0.0
    %1195 = vmatprep.subr.mxu0 0.0
    %1196 = vmatpush1.msra.mxu0 0.0
    %1197 = vmatprep.subr.mxu0 0.0
    %1198 = vmatpush1.msra.mxu0 0.0
    %1199 = vmatprep.subr.mxu0 0.0
    %1200 = vmatpush1.msra.mxu0 0.0
    %1201 = vmatprep.subr.mxu0 0.0
    %1202 = vmatpush1.msra.mxu0 0.0
    %1203 = vmatprep.subr.mxu0 0.0
    %1204 = vmatpush1.msra.mxu0 0.0
    %1205 = vmatprep.subr.mxu0 0.0
    %1206 = vmatpush1.msra.mxu0 0.0
    %1207 = vmatprep.subr.mxu0 0.0
    %1208 = vmatpush1.msra.mxu0 0.0
    %1209 = vmatprep.subr.mxu0 0.0
    %1210 = vmatpush1.msra.mxu0 0.0
    %1211 = vmatprep.subr.mxu0 0.0
    %1212 = vmatpush1.msra.mxu0 0.0
    %1213 = vmatprep.subr.mxu0 0.0
    %1214 = vmatpush1.msra.mxu0 0.0
    %1215 = vmatprep.subr.mxu0 0.0
    %1216 = vmatpush1.msra.mxu0 0.0
    %1217 = vmatprep.subr.mxu0 0.0
    %1218 = vmatpush1.msra.mxu0 0.0
    %1219 = vmatprep.subr.mxu0 0.0
    %1220 = vmatpush1.msra.mxu0 0.0
    %1221 = vmatprep.subr.mxu0 0.0
    %1222 = vmatpush1.msra.mxu0 0.0
    %1223 = vmatprep.subr.mxu0 0.0
    %1224 = vmatpush1.msra.mxu0 0.0
    %1225 = vmatprep.subr.mxu0 0.0
    %1226 = vmatpush1.msra.mxu0 0.0
    %1227 = vmatprep.subr.mxu0 0.0
    %1228 = vmatpush1.msra.mxu0 0.0
    %1229 = vmatprep.subr.mxu0 0.0
    %1230 = vmatpush1.msra.mxu0 0.0
    %1231 = vmatprep.subr.mxu0 0.0
    %1232 = vmatpush1.msra.mxu0 0.0
    %1233 = vmatprep.subr.mxu0 0.0
    %1234 = vmatpush1.msra.mxu0 0.0
    %1235 = vmatprep.subr.mxu0 0.0
    %1236 = vmatpush1.msra.mxu0 0.0
    %1237 = vmatprep.subr.mxu0 0.0
    %1238 = vmatpush1.msra.mxu0 0.0
    %1239 = vmatprep.mubr.f32.mxu0 0.0
    %1240 = vmatmul.mubr.f32.gmra.mrb[0].mxu0 %v1171
    %v1241 = vpop.f32.mrb[0].mxu0
    %v1242 = vadd.f32 %v1141, %v1241
    %v1243 = vpop.f32.mrb[0].mxu0
    %1244 = vmatprep.mubr.f32.mxu0 0.0
    %1245 = vmatmul.mubr.f32.gmra.mrb[0].mxu0 %v1173
    %v1246 = vpop.f32.mrb[0].mxu0
    %v1247 = vadd.f32 %v1146, %v1246
    %v1248 = vpop.f32.mrb[0].mxu0
    %1249 = vdwg.mxu0
    %s1250 = scalar_lea.vmem [#allocation2], 32
    %v1251 = vld [vmem:[%s1250] sm:$0xff]
    %v1252 = vld [vmem:[%s1250 + $0x8] sm:$0xff]
    %v1255 = vlaneseq
    %v1256 = vshrl.u32 %v1255, 7
    %v1257 = vsub.s32 0, %v1256
    %v1258 = vrot.slane %v969, %v1257
    %v1259 = vlaneseq
    %v1260 = vshrl.u32 %v1259, 7
    %v1261 = vsub.s32 0, %v1260
    %v1262 = vrot.slane %v978, %v1261
    %v1263 = vsel %vm1054, %v1009, %v1005
    %v1264 = vsel %vm176, %v1013, %v1263
    %v1265 = vsel %vm1057, %v1017, %v1264
    %v1266 = vsel %vm178, %v1021, %v1265
    %v1267 = vsel %vm1060, %v1025, %v1266
    %v1268 = vsel %vm180, %v1258, %v1267
    %v1269 = vsel %vm1063, %v1033, %v1268
    %v1270 = vsel %vm1054, %v1041, %v1037
    %v1271 = vsel %vm176, %v1045, %v1270
    %v1272 = vsel %vm1057, %v1049, %v1271
    %v1273 = vsel %vm178, %v1053, %v1272
    %v1274 = vsel %vm1060, %v1262, %v1273
    %v1275 = vsel %vm317, %v1269, 0
    %v1277 = vsel %vm317, %v1274, 0
    %1279 = vmatprep.subr.mxu0 0.0
    %1280 = vmatpush1.msra.mxu0 %v1251
    %1281 = vmatprep.subr.mxu0 0.0
    %1282 = vmatpush1.msra.mxu0 %v1252
    %1283 = vmatprep.subr.mxu0 0.0
    %1284 = vmatpush1.msra.mxu0 0.0
    %1285 = vmatprep.subr.mxu0 0.0
    %1286 = vmatpush1.msra.mxu0 0.0
    %1287 = vmatprep.subr.mxu0 0.0
    %1288 = vmatpush1.msra.mxu0 0.0
    %1289 = vmatprep.subr.mxu0 0.0
    %1290 = vmatpush1.msra.mxu0 0.0
    %1291 = vmatprep.subr.mxu0 0.0
    %1292 = vmatpush1.msra.mxu0 0.0
    %1293 = vmatprep.subr.mxu0 0.0
    %1294 = vmatpush1.msra.mxu0 0.0
    %1295 = vmatprep.subr.mxu0 0.0
    %1296 = vmatpush1.msra.mxu0 0.0
    %1297 = vmatprep.subr.mxu0 0.0
    %1298 = vmatpush1.msra.mxu0 0.0
    %1299 = vmatprep.subr.mxu0 0.0
    %1300 = vmatpush1.msra.mxu0 0.0
    %1301 = vmatprep.subr.mxu0 0.0
    %1302 = vmatpush1.msra.mxu0 0.0
    %1303 = vmatprep.subr.mxu0 0.0
    %1304 = vmatpush1.msra.mxu0 0.0
    %1305 = vmatprep.subr.mxu0 0.0
    %1306 = vmatpush1.msra.mxu0 0.0
    %1307 = vmatprep.subr.mxu0 0.0
    %1308 = vmatpush1.msra.mxu0 0.0
    %1309 = vmatprep.subr.mxu0 0.0
    %1310 = vmatpush1.msra.mxu0 0.0
    %1311 = vmatprep.subr.mxu0 0.0
    %1312 = vmatpush1.msra.mxu0 0.0
    %1313 = vmatprep.subr.mxu0 0.0
    %1314 = vmatpush1.msra.mxu0 0.0
    %1315 = vmatprep.subr.mxu0 0.0
    %1316 = vmatpush1.msra.mxu0 0.0
    %1317 = vmatprep.subr.mxu0 0.0
    %1318 = vmatpush1.msra.mxu0 0.0
    %1319 = vmatprep.subr.mxu0 0.0
    %1320 = vmatpush1.msra.mxu0 0.0
    %1321 = vmatprep.subr.mxu0 0.0
    %1322 = vmatpush1.msra.mxu0 0.0
    %1323 = vmatprep.subr.mxu0 0.0
    %1324 = vmatpush1.msra.mxu0 0.0
    %1325 = vmatprep.subr.mxu0 0.0
    %1326 = vmatpush1.msra.mxu0 0.0
    %1327 = vmatprep.subr.mxu0 0.0
    %1328 = vmatpush1.msra.mxu0 0.0
    %1329 = vmatprep.subr.mxu0 0.0
    %1330 = vmatpush1.msra.mxu0 0.0
    %1331 = vmatprep.subr.mxu0 0.0
    %1332 = vmatpush1.msra.mxu0 0.0
    %1333 = vmatprep.subr.mxu0 0.0
    %1334 = vmatpush1.msra.mxu0 0.0
    %1335 = vmatprep.subr.mxu0 0.0
    %1336 = vmatpush1.msra.mxu0 0.0
    %1337 = vmatprep.subr.mxu0 0.0
    %1338 = vmatpush1.msra.mxu0 0.0
    %1339 = vmatprep.subr.mxu0 0.0
    %1340 = vmatpush1.msra.mxu0 0.0
    %1341 = vmatprep.subr.mxu0 0.0
    %1342 = vmatpush1.msra.mxu0 0.0
    %1343 = vmatprep.mubr.f32.mxu0 0.0
    %1344 = vmatmul.mubr.f32.gmra.mrb[0].mxu0 %v1275
    %v1345 = vpop.f32.mrb[0].mxu0
    %v1346 = vadd.f32 0.0, %v1345
    %v1347 = vpop.f32.mrb[0].mxu0
    %1348 = vmatprep.mubr.f32.mxu0 0.0
    %1349 = vmatmul.mubr.f32.gmra.mrb[0].mxu0 %v1277
    %v1350 = vpop.f32.mrb[0].mxu0
    %v1351 = vadd.f32 0.0, %v1350
    %v1352 = vpop.f32.mrb[0].mxu0
    %1353 = vdwg.mxu0
    %v1354 = vadd.f32 %v1242, %v1346
    %v1355 = vadd.f32 %v1247, %v1351
    %v1356 = vld [vmem:[%s4] sm:$0x1]
    %v1358 = vlaneseq
    %v1359 = vshrl.u32 %v1358, 7
    %v1360 = vsub.s32 0, %v1359
    %v1361 = vrot.slane %v1356, %v1360
    %v1363 = vadd.f32 %v1354, %v1361
    %v1364 = vadd.f32 %v1355, %v1361
    %v1367 = vcombine.high %v1363, %v1363
    %v1369 = vunpack.c.l.s4 1966171168
    %v1370 = vunpack.c.0.s8 %v1369
    %v1371 = vlaneseq
    %v1372 = vshrl.u32 %v1371, 7
    %v1373 = vsub.s32 %v1370, %v1372
    %v1374 = vrot.slane %v1363, %v1373
    %v1376 = vunpack.c.l.s4 1966171168
    %v1377 = vunpack.c.0.s8 %v1376
    %v1378 = vlaneseq
    %v1379 = vshrl.u32 %v1378, 7
    %v1380 = vsub.s32 %v1377, %v1379
    %v1381 = vrot.slane %v1367, %v1380
    %v1382 = vcombine.high %v1374, %v1374
    %v1383 = vcombine.high %v1381, %v1381
    %v1385 = vunpack.c.l.s4 1966171168
    %v1386 = vunpack.c.0.s8 %v1385
    %v1387 = vlaneseq
    %v1388 = vshrl.u32 %v1387, 7
    %v1389 = vsub.s32 %v1386, %v1388
    %v1390 = vrot.slane %v1374, %v1389
    %v1392 = vunpack.c.l.s4 1966171168
    %v1393 = vunpack.c.0.s8 %v1392
    %v1394 = vlaneseq
    %v1395 = vshrl.u32 %v1394, 7
    %v1396 = vsub.s32 %v1393, %v1395
    %v1397 = vrot.slane %v1381, %v1396
    %v1399 = vunpack.c.l.s4 1966171168
    %v1400 = vunpack.c.0.s8 %v1399
    %v1401 = vlaneseq
    %v1402 = vshrl.u32 %v1401, 7
    %v1403 = vsub.s32 %v1400, %v1402
    %v1404 = vrot.slane %v1382, %v1403
    %v1406 = vunpack.c.l.s4 1966171168
    %v1407 = vunpack.c.0.s8 %v1406
    %v1408 = vlaneseq
    %v1409 = vshrl.u32 %v1408, 7
    %v1410 = vsub.s32 %v1407, %v1409
    %v1411 = vrot.slane %v1383, %v1410
    %v1412 = vcombine.high %v1390, %v1390
    %v1413 = vcombine.high %v1404, %v1404
    %v1414 = vcombine.high %v1411, %v1411
    %v1415 = vcombine.high %v1364, %v1364
    %v1417 = vunpack.c.l.s4 1966171168
    %v1418 = vunpack.c.0.s8 %v1417
    %v1419 = vlaneseq
    %v1420 = vshrl.u32 %v1419, 7
    %v1421 = vsub.s32 %v1418, %v1420
    %v1422 = vrot.slane %v1364, %v1421
    %v1424 = vunpack.c.l.s4 1966171168
    %v1425 = vunpack.c.0.s8 %v1424
    %v1426 = vlaneseq
    %v1427 = vshrl.u32 %v1426, 7
    %v1428 = vsub.s32 %v1425, %v1427
    %v1429 = vrot.slane %v1415, %v1428
    %v1430 = vcombine.high %v1422, %v1422
    %v1432 = vunpack.c.l.s4 1966171168
    %v1433 = vunpack.c.0.s8 %v1432
    %v1434 = vlaneseq
    %v1435 = vshrl.u32 %v1434, 7
    %v1436 = vsub.s32 %v1433, %v1435
    %v1437 = vrot.slane %v1422, %v1436
    %v1439 = vunpack.c.l.s4 1966171168
    %v1440 = vunpack.c.0.s8 %v1439
    %v1441 = vlaneseq
    %v1442 = vshrl.u32 %v1441, 7
    %v1443 = vsub.s32 %v1440, %v1442
    %v1444 = vrot.slane %v1429, %v1443
    %v1446 = vunpack.c.l.s4 1966171168
    %v1447 = vunpack.c.0.s8 %v1446
    %v1448 = vlaneseq
    %v1449 = vshrl.u32 %v1448, 7
    %v1450 = vsub.s32 %v1447, %v1449
    %v1451 = vrot.slane %v1430, %v1450
    %v1452 = vcombine.high %v1437, %v1437
    %v1453 = vcombine.high %v1451, %v1451
    %v1466 = vmax.f32 %v1390, %v1404
    %v1467 = vmax.f32 %v1412, %v1413
    %v1468 = vmax.f32 %v1397, %v1411
    %v1469 = vmax.f32 %v1414, %v1437
    %v1470 = vmax.f32 %v1451, %v1452
    %v1471 = vmax.f32 %v1453, %v1444
    %v1472 = vmax.f32 %v1466, 0.0
    %v1473 = vmax.f32 %v1467, 0.0
    %v1474 = vmax.f32 %v1468, 0.0
    %v1475 = vmax.f32 %v1469, 0.0
    %v1476 = vmax.f32 %v1470, 0.0
    %v1477 = vmax.f32 %v1471, 0.0
    %v1478 = vld [vmem:[%s5] sm:$0xff]
    %v1479 = vld [vmem:[%s5 + $0x8] sm:$0xff]
    %v1480 = vld [vmem:[%s5 + $0x10] sm:$0xff]
    %v1481 = vld [vmem:[%s5 + $0x18] sm:$0xff]
    %v1482 = vld [vmem:[%s7] sm:$0x1]
    %v1484 = vlaneseq
    %v1485 = vshrl.u32 %v1484, 7
    %v1486 = vsub.s32 0, %v1485
    %v1487 = vrot.slane %v1482, %v1486
    %v1495 = vcombine.low %v1472, %v1473
    %v1496 = vcombine.low %v1474, %v1475
    %v1497 = vcombine.low %v1476, %v1477
    %v1499 = vunpack.c.l.s4 1966171168
    %v1500 = vunpack.c.0.s8 %v1499
    %v1501 = vlaneseq
    %v1502 = vshrl.u32 %v1501, 7
    %v1503 = vsub.s32 %v1500, %v1502
    %v1504 = vrot.slane %v1495, %v1503
    %v1506 = vunpack.c.l.s4 1966171168
    %v1507 = vunpack.c.0.s8 %v1506
    %v1508 = vlaneseq
    %v1509 = vshrl.u32 %v1508, 7
    %v1510 = vsub.s32 %v1507, %v1509
    %v1511 = vrot.slane %v1496, %v1510
    %v1513 = vunpack.c.l.s4 1966171168
    %v1514 = vunpack.c.0.s8 %v1513
    %v1515 = vlaneseq
    %v1516 = vshrl.u32 %v1515, 7
    %v1517 = vsub.s32 %v1514, %v1516
    %v1518 = vrot.slane %v1497, %v1517
    %v1519 = vcombine.low %v1504, %v1511
    %v1521 = vunpack.c.l.s4 1966171168
    %v1522 = vunpack.c.0.s8 %v1521
    %v1523 = vlaneseq
    %v1524 = vshrl.u32 %v1523, 7
    %v1525 = vsub.s32 %v1522, %v1524
    %v1526 = vrot.slane %v1519, %v1525
    %v1528 = vunpack.c.l.s4 1966171168
    %v1529 = vunpack.c.0.s8 %v1528
    %v1530 = vlaneseq
    %v1531 = vshrl.u32 %v1530, 7
    %v1532 = vsub.s32 %v1529, %v1531
    %v1533 = vrot.slane %v1518, %v1532
    %v1534 = vcombine.low %v1526, %v1533
    %vm1535 = vcmask 261120
    %v1536 = vsel %vm1535, %v1534, 0
    %1538 = vmatprep.subr.mxu0 0.0
    %1539 = vmatpush1.msra.mxu0 %v1478
    %1540 = vmatprep.subr.mxu0 0.0
    %1541 = vmatpush1.msra.mxu0 %v1479
    %1542 = vmatprep.subr.mxu0 0.0
    %1543 = vmatpush1.msra.mxu0 %v1480
    %1544 = vmatprep.subr.mxu0 0.0
    %1545 = vmatpush1.msra.mxu0 %v1481
    %1546 = vmatprep.subr.mxu0 0.0
    %1547 = vmatpush1.msra.mxu0 0.0
    %1548 = vmatprep.subr.mxu0 0.0
    %1549 = vmatpush1.msra.mxu0 0.0
    %1550 = vmatprep.subr.mxu0 0.0
    %1551 = vmatpush1.msra.mxu0 0.0
    %1552 = vmatprep.subr.mxu0 0.0
    %1553 = vmatpush1.msra.mxu0 0.0
    %1554 = vmatprep.subr.mxu0 0.0
    %1555 = vmatpush1.msra.mxu0 0.0
    %1556 = vmatprep.subr.mxu0 0.0
    %1557 = vmatpush1.msra.mxu0 0.0
    %1558 = vmatprep.subr.mxu0 0.0
    %1559 = vmatpush1.msra.mxu0 0.0
    %1560 = vmatprep.subr.mxu0 0.0
    %1561 = vmatpush1.msra.mxu0 0.0
    %1562 = vmatprep.subr.mxu0 0.0
    %1563 = vmatpush1.msra.mxu0 0.0
    %1564 = vmatprep.subr.mxu0 0.0
    %1565 = vmatpush1.msra.mxu0 0.0
    %1566 = vmatprep.subr.mxu0 0.0
    %1567 = vmatpush1.msra.mxu0 0.0
    %1568 = vmatprep.subr.mxu0 0.0
    %1569 = vmatpush1.msra.mxu0 0.0
    %1570 = vmatprep.subr.mxu0 0.0
    %1571 = vmatpush1.msra.mxu0 0.0
    %1572 = vmatprep.subr.mxu0 0.0
    %1573 = vmatpush1.msra.mxu0 0.0
    %1574 = vmatprep.subr.mxu0 0.0
    %1575 = vmatpush1.msra.mxu0 0.0
    %1576 = vmatprep.subr.mxu0 0.0
    %1577 = vmatpush1.msra.mxu0 0.0
    %1578 = vmatprep.subr.mxu0 0.0
    %1579 = vmatpush1.msra.mxu0 0.0
    %1580 = vmatprep.subr.mxu0 0.0
    %1581 = vmatpush1.msra.mxu0 0.0
    %1582 = vmatprep.subr.mxu0 0.0
    %1583 = vmatpush1.msra.mxu0 0.0
    %1584 = vmatprep.subr.mxu0 0.0
    %1585 = vmatpush1.msra.mxu0 0.0
    %1586 = vmatprep.subr.mxu0 0.0
    %1587 = vmatpush1.msra.mxu0 0.0
    %1588 = vmatprep.subr.mxu0 0.0
    %1589 = vmatpush1.msra.mxu0 0.0
    %1590 = vmatprep.subr.mxu0 0.0
    %1591 = vmatpush1.msra.mxu0 0.0
    %1592 = vmatprep.subr.mxu0 0.0
    %1593 = vmatpush1.msra.mxu0 0.0
    %1594 = vmatprep.subr.mxu0 0.0
    %1595 = vmatpush1.msra.mxu0 0.0
    %1596 = vmatprep.subr.mxu0 0.0
    %1597 = vmatpush1.msra.mxu0 0.0
    %1598 = vmatprep.subr.mxu0 0.0
    %1599 = vmatpush1.msra.mxu0 0.0
    %1600 = vmatprep.subr.mxu0 0.0
    %1601 = vmatpush1.msra.mxu0 0.0
    %1602 = vmatprep.mubr.f32.mxu0 0.0
    %1603 = vmatmul.mubr.f32.gmra.mrb[0].mxu0 %v1536
    %v1604 = vpop.f32.mrb[0].mxu0
    %v1605 = vadd.f32 %v1487, %v1604
    %v1606 = vpop.f32.mrb[0].mxu0
    %1607 = vdwg.mxu0
    %v1609 = vcombine.high %v1605, %v1605
    %v1611 = vunpack.c.l.s4 1966171168
    %v1612 = vunpack.c.0.s8 %v1611
    %v1613 = vlaneseq
    %v1614 = vshrl.u32 %v1613, 7
    %v1615 = vsub.s32 %v1612, %v1614
    %v1616 = vrot.slane %v1605, %v1615
    %v1618 = vunpack.c.l.s4 1966171168
    %v1619 = vunpack.c.0.s8 %v1618
    %v1620 = vlaneseq
    %v1621 = vshrl.u32 %v1620, 7
    %v1622 = vsub.s32 %v1619, %v1621
    %v1623 = vrot.slane %v1609, %v1622
    %v1624 = vcombine.high %v1616, %v1616
    %v1625 = vcombine.high %v1623, %v1623
    %v1627 = vunpack.c.l.s4 1966171168
    %v1628 = vunpack.c.0.s8 %v1627
    %v1629 = vlaneseq
    %v1630 = vshrl.u32 %v1629, 7
    %v1631 = vsub.s32 %v1628, %v1630
    %v1632 = vrot.slane %v1616, %v1631
    %v1634 = vunpack.c.l.s4 1966171168
    %v1635 = vunpack.c.0.s8 %v1634
    %v1636 = vlaneseq
    %v1637 = vshrl.u32 %v1636, 7
    %v1638 = vsub.s32 %v1635, %v1637
    %v1639 = vrot.slane %v1623, %v1638
    %v1641 = vunpack.c.l.s4 1966171168
    %v1642 = vunpack.c.0.s8 %v1641
    %v1643 = vlaneseq
    %v1644 = vshrl.u32 %v1643, 7
    %v1645 = vsub.s32 %v1642, %v1644
    %v1646 = vrot.slane %v1624, %v1645
    %v1648 = vunpack.c.l.s4 1966171168
    %v1649 = vunpack.c.0.s8 %v1648
    %v1650 = vlaneseq
    %v1651 = vshrl.u32 %v1650, 7
    %v1652 = vsub.s32 %v1649, %v1651
    %v1653 = vrot.slane %v1625, %v1652
    %v1654 = vcombine.high %v1632, %v1632
    %v1655 = vcombine.high %v1646, %v1646
    %v1662 = vld [vmem:[#allocation5] sm:$0xff]
    %v1663 = vld [vmem:[#allocation5 + $0x8] sm:$0xff]
    %v1664 = vld [vmem:[#allocation5 + $0x10] sm:$0xff]
    %v1665 = vld [vmem:[#allocation5 + $0x18] sm:$0xff]
    %v1667 = vsel %vm1535, 0.0, 0
    %1669 = vmatprep.subr.mxu0 0.0
    %1670 = vmatpush1.msra.mxu0 %v1662
    %1671 = vmatprep.subr.mxu0 0.0
    %1672 = vmatpush1.msra.mxu0 %v1663
    %1673 = vmatprep.subr.mxu0 0.0
    %1674 = vmatpush1.msra.mxu0 %v1664
    %1675 = vmatprep.subr.mxu0 0.0
    %1676 = vmatpush1.msra.mxu0 %v1665
    %1677 = vmatprep.subr.mxu0 0.0
    %1678 = vmatpush1.msra.mxu0 0.0
    %1679 = vmatprep.subr.mxu0 0.0
    %1680 = vmatpush1.msra.mxu0 0.0
    %1681 = vmatprep.subr.mxu0 0.0
    %1682 = vmatpush1.msra.mxu0 0.0
    %1683 = vmatprep.subr.mxu0 0.0
    %1684 = vmatpush1.msra.mxu0 0.0
    %1685 = vmatprep.subr.mxu0 0.0
    %1686 = vmatpush1.msra.mxu0 0.0
    %1687 = vmatprep.subr.mxu0 0.0
    %1688 = vmatpush1.msra.mxu0 0.0
    %1689 = vmatprep.subr.mxu0 0.0
    %1690 = vmatpush1.msra.mxu0 0.0
    %1691 = vmatprep.subr.mxu0 0.0
    %1692 = vmatpush1.msra.mxu0 0.0
    %1693 = vmatprep.subr.mxu0 0.0
    %1694 = vmatpush1.msra.mxu0 0.0
    %1695 = vmatprep.subr.mxu0 0.0
    %1696 = vmatpush1.msra.mxu0 0.0
    %1697 = vmatprep.subr.mxu0 0.0
    %1698 = vmatpush1.msra.mxu0 0.0
    %1699 = vmatprep.subr.mxu0 0.0
    %1700 = vmatpush1.msra.mxu0 0.0
    %1701 = vmatprep.subr.mxu0 0.0
    %1702 = vmatpush1.msra.mxu0 0.0
    %1703 = vmatprep.subr.mxu0 0.0
    %1704 = vmatpush1.msra.mxu0 0.0
    %1705 = vmatprep.subr.mxu0 0.0
    %1706 = vmatpush1.msra.mxu0 0.0
    %1707 = vmatprep.subr.mxu0 0.0
    %1708 = vmatpush1.msra.mxu0 0.0
    %1709 = vmatprep.subr.mxu0 0.0
    %1710 = vmatpush1.msra.mxu0 0.0
    %1711 = vmatprep.subr.mxu0 0.0
    %1712 = vmatpush1.msra.mxu0 0.0
    %1713 = vmatprep.subr.mxu0 0.0
    %1714 = vmatpush1.msra.mxu0 0.0
    %1715 = vmatprep.subr.mxu0 0.0
    %1716 = vmatpush1.msra.mxu0 0.0
    %1717 = vmatprep.subr.mxu0 0.0
    %1718 = vmatpush1.msra.mxu0 0.0
    %1719 = vmatprep.subr.mxu0 0.0
    %1720 = vmatpush1.msra.mxu0 0.0
    %1721 = vmatprep.subr.mxu0 0.0
    %1722 = vmatpush1.msra.mxu0 0.0
    %1723 = vmatprep.subr.mxu0 0.0
    %1724 = vmatpush1.msra.mxu0 0.0
    %1725 = vmatprep.subr.mxu0 0.0
    %1726 = vmatpush1.msra.mxu0 0.0
    %1727 = vmatprep.subr.mxu0 0.0
    %1728 = vmatpush1.msra.mxu0 0.0
    %1729 = vmatprep.subr.mxu0 0.0
    %1730 = vmatpush1.msra.mxu0 0.0
    %1731 = vmatprep.subr.mxu0 0.0
    %1732 = vmatpush1.msra.mxu0 0.0
    %1733 = vmatprep.mubr.f32.mxu0 0.0
    %1734 = vmatmul.mubr.f32.gmra.mrb[0].mxu0 %v1667
    %v1735 = vpop.f32.mrb[0].mxu0
    %v1736 = vadd.f32 0.0, %v1735
    %v1737 = vpop.f32.mrb[0].mxu0
    %1738 = vdwg.mxu0
    %v1741 = vunpack.c.l.s4 1966171168
    %v1742 = vunpack.c.0.s8 %v1741
    %v1743 = vlaneseq
    %v1744 = vshrl.u32 %v1743, 7
    %v1745 = vsub.s32 %v1742, %v1744
    %v1746 = vrot.slane %v1736, %v1745
    %v1747 = vcombine.high %v1746, %v1746
    %v1749 = vunpack.c.l.s4 1966171168
    %v1750 = vunpack.c.0.s8 %v1749
    %v1751 = vlaneseq
    %v1752 = vshrl.u32 %v1751, 7
    %v1753 = vsub.s32 %v1750, %v1752
    %v1754 = vrot.slane %v1746, %v1753
    %v1756 = vunpack.c.l.s4 1966171168
    %v1757 = vunpack.c.0.s8 %v1756
    %v1758 = vlaneseq
    %v1759 = vshrl.u32 %v1758, 7
    %v1760 = vsub.s32 %v1757, %v1759
    %v1761 = vrot.slane %v1747, %v1760
    %v1764 = vadd.f32 %v1632, %v1754
    %v1765 = vadd.f32 %v1655, %v1761
    %v1766 = vmax.f32 %v1764, 0.0
    %v1767 = vmax.f32 %v1765, 0.0
    %v1770 = vcombine.low %v1766, %v1767
    %v1772 = vunpack.c.l.s4 1966171168
    %v1773 = vunpack.c.0.s8 %v1772
    %v1774 = vlaneseq
    %v1775 = vshrl.u32 %v1774, 7
    %v1776 = vsub.s32 %v1773, %v1775
    %v1777 = vrot.slane %v1770, %v1776
    %v1779 = vunpack.c.l.s4 1966171168
    %v1780 = vunpack.c.0.s8 %v1779
    %v1781 = vlaneseq
    %v1782 = vshrl.u32 %v1781, 7
    %v1783 = vsub.s32 %v1780, %v1782
    %v1784 = vrot.slane %v1777, %v1783
    %v1785 = vsel %vm1535, %v1784, 0
    %1787 = vmatprep.subr.mxu0 0.0
    %1788 = vmatpush1.msra.mxu0 %v1662
    %1789 = vmatprep.subr.mxu0 0.0
    %1790 = vmatpush1.msra.mxu0 %v1663
    %1791 = vmatprep.subr.mxu0 0.0
    %1792 = vmatpush1.msra.mxu0 %v1664
    %1793 = vmatprep.subr.mxu0 0.0
    %1794 = vmatpush1.msra.mxu0 %v1665
    %1795 = vmatprep.subr.mxu0 0.0
    %1796 = vmatpush1.msra.mxu0 0.0
    %1797 = vmatprep.subr.mxu0 0.0
    %1798 = vmatpush1.msra.mxu0 0.0
    %1799 = vmatprep.subr.mxu0 0.0
    %1800 = vmatpush1.msra.mxu0 0.0
    %1801 = vmatprep.subr.mxu0 0.0
    %1802 = vmatpush1.msra.mxu0 0.0
    %1803 = vmatprep.subr.mxu0 0.0
    %1804 = vmatpush1.msra.mxu0 0.0
    %1805 = vmatprep.subr.mxu0 0.0
    %1806 = vmatpush1.msra.mxu0 0.0
    %1807 = vmatprep.subr.mxu0 0.0
    %1808 = vmatpush1.msra.mxu0 0.0
    %1809 = vmatprep.subr.mxu0 0.0
    %1810 = vmatpush1.msra.mxu0 0.0
    %1811 = vmatprep.subr.mxu0 0.0
    %1812 = vmatpush1.msra.mxu0 0.0
    %1813 = vmatprep.subr.mxu0 0.0
    %1814 = vmatpush1.msra.mxu0 0.0
    %1815 = vmatprep.subr.mxu0 0.0
    %1816 = vmatpush1.msra.mxu0 0.0
    %1817 = vmatprep.subr.mxu0 0.0
    %1818 = vmatpush1.msra.mxu0 0.0
    %1819 = vmatprep.subr.mxu0 0.0
    %1820 = vmatpush1.msra.mxu0 0.0
    %1821 = vmatprep.subr.mxu0 0.0
    %1822 = vmatpush1.msra.mxu0 0.0
    %1823 = vmatprep.subr.mxu0 0.0
    %1824 = vmatpush1.msra.mxu0 0.0
    %1825 = vmatprep.subr.mxu0 0.0
    %1826 = vmatpush1.msra.mxu0 0.0
    %1827 = vmatprep.subr.mxu0 0.0
    %1828 = vmatpush1.msra.mxu0 0.0
    %1829 = vmatprep.subr.mxu0 0.0
    %1830 = vmatpush1.msra.mxu0 0.0
    %1831 = vmatprep.subr.mxu0 0.0
    %1832 = vmatpush1.msra.mxu0 0.0
    %1833 = vmatprep.subr.mxu0 0.0
    %1834 = vmatpush1.msra.mxu0 0.0
    %1835 = vmatprep.subr.mxu0 0.0
    %1836 = vmatpush1.msra.mxu0 0.0
    %1837 = vmatprep.subr.mxu0 0.0
    %1838 = vmatpush1.msra.mxu0 0.0
    %1839 = vmatprep.subr.mxu0 0.0
    %1840 = vmatpush1.msra.mxu0 0.0
    %1841 = vmatprep.subr.mxu0 0.0
    %1842 = vmatpush1.msra.mxu0 0.0
    %1843 = vmatprep.subr.mxu0 0.0
    %1844 = vmatpush1.msra.mxu0 0.0
    %1845 = vmatprep.subr.mxu0 0.0
    %1846 = vmatpush1.msra.mxu0 0.0
    %1847 = vmatprep.subr.mxu0 0.0
    %1848 = vmatpush1.msra.mxu0 0.0
    %1849 = vmatprep.subr.mxu0 0.0
    %1850 = vmatpush1.msra.mxu0 0.0
    %1851 = vmatprep.mubr.f32.mxu0 0.0
    %1852 = vmatmul.mubr.f32.gmra.mrb[0].mxu0 %v1785
    %v1853 = vpop.f32.mrb[0].mxu0
    %v1854 = vadd.f32 0.0, %v1853
    %v1855 = vpop.f32.mrb[0].mxu0
    %1856 = vdwg.mxu0
    %v1859 = vunpack.c.l.s4 1966171168
    %v1860 = vunpack.c.0.s8 %v1859
    %v1861 = vlaneseq
    %v1862 = vshrl.u32 %v1861, 7
    %v1863 = vsub.s32 %v1860, %v1862
    %v1864 = vrot.slane %v1854, %v1863
    %v1865 = vcombine.high %v1864, %v1864
    %v1867 = vunpack.c.l.s4 1966171168
    %v1868 = vunpack.c.0.s8 %v1867
    %v1869 = vlaneseq
    %v1870 = vshrl.u32 %v1869, 7
    %v1871 = vsub.s32 %v1868, %v1870
    %v1872 = vrot.slane %v1864, %v1871
    %v1874 = vunpack.c.l.s4 1966171168
    %v1875 = vunpack.c.0.s8 %v1874
    %v1876 = vlaneseq
    %v1877 = vshrl.u32 %v1876, 7
    %v1878 = vsub.s32 %v1875, %v1877
    %v1879 = vrot.slane %v1865, %v1878
    %v1882 = vadd.f32 %v1646, %v1872
    %v1883 = vadd.f32 %v1639, %v1879
    %v1884 = vmax.f32 %v1882, 0.0
    %v1885 = vmax.f32 %v1883, 0.0
    %v1888 = vcombine.low %v1884, %v1885
    %v1890 = vunpack.c.l.s4 1966171168
    %v1891 = vunpack.c.0.s8 %v1890
    %v1892 = vlaneseq
    %v1893 = vshrl.u32 %v1892, 7
    %v1894 = vsub.s32 %v1891, %v1893
    %v1895 = vrot.slane %v1888, %v1894
    %v1897 = vunpack.c.l.s4 1966171168
    %v1898 = vunpack.c.0.s8 %v1897
    %v1899 = vlaneseq
    %v1900 = vshrl.u32 %v1899, 7
    %v1901 = vsub.s32 %v1898, %v1900
    %v1902 = vrot.slane %v1895, %v1901
    %v1903 = vsel %vm1535, %v1902, 0
    %1905 = vmatprep.subr.mxu0 0.0
    %1906 = vmatpush1.msra.mxu0 %v1662
    %1907 = vmatprep.subr.mxu0 0.0
    %1908 = vmatpush1.msra.mxu0 %v1663
    %1909 = vmatprep.subr.mxu0 0.0
    %1910 = vmatpush1.msra.mxu0 %v1664
    %1911 = vmatprep.subr.mxu0 0.0
    %1912 = vmatpush1.msra.mxu0 %v1665
    %1913 = vmatprep.subr.mxu0 0.0
    %1914 = vmatpush1.msra.mxu0 0.0
    %1915 = vmatprep.subr.mxu0 0.0
    %1916 = vmatpush1.msra.mxu0 0.0
    %1917 = vmatprep.subr.mxu0 0.0
    %1918 = vmatpush1.msra.mxu0 0.0
    %1919 = vmatprep.subr.mxu0 0.0
    %1920 = vmatpush1.msra.mxu0 0.0
    %1921 = vmatprep.subr.mxu0 0.0
    %1922 = vmatpush1.msra.mxu0 0.0
    %1923 = vmatprep.subr.mxu0 0.0
    %1924 = vmatpush1.msra.mxu0 0.0
    %1925 = vmatprep.subr.mxu0 0.0
    %1926 = vmatpush1.msra.mxu0 0.0
    %1927 = vmatprep.subr.mxu0 0.0
    %1928 = vmatpush1.msra.mxu0 0.0
    %1929 = vmatprep.subr.mxu0 0.0
    %1930 = vmatpush1.msra.mxu0 0.0
    %1931 = vmatprep.subr.mxu0 0.0
    %1932 = vmatpush1.msra.mxu0 0.0
    %1933 = vmatprep.subr.mxu0 0.0
    %1934 = vmatpush1.msra.mxu0 0.0
    %1935 = vmatprep.subr.mxu0 0.0
    %1936 = vmatpush1.msra.mxu0 0.0
    %1937 = vmatprep.subr.mxu0 0.0
    %1938 = vmatpush1.msra.mxu0 0.0
    %1939 = vmatprep.subr.mxu0 0.0
    %1940 = vmatpush1.msra.mxu0 0.0
    %1941 = vmatprep.subr.mxu0 0.0
    %1942 = vmatpush1.msra.mxu0 0.0
    %1943 = vmatprep.subr.mxu0 0.0
    %1944 = vmatpush1.msra.mxu0 0.0
    %1945 = vmatprep.subr.mxu0 0.0
    %1946 = vmatpush1.msra.mxu0 0.0
    %1947 = vmatprep.subr.mxu0 0.0
    %1948 = vmatpush1.msra.mxu0 0.0
    %1949 = vmatprep.subr.mxu0 0.0
    %1950 = vmatpush1.msra.mxu0 0.0
    %1951 = vmatprep.subr.mxu0 0.0
    %1952 = vmatpush1.msra.mxu0 0.0
    %1953 = vmatprep.subr.mxu0 0.0
    %1954 = vmatpush1.msra.mxu0 0.0
    %1955 = vmatprep.subr.mxu0 0.0
    %1956 = vmatpush1.msra.mxu0 0.0
    %1957 = vmatprep.subr.mxu0 0.0
    %1958 = vmatpush1.msra.mxu0 0.0
    %1959 = vmatprep.subr.mxu0 0.0
    %1960 = vmatpush1.msra.mxu0 0.0
    %1961 = vmatprep.subr.mxu0 0.0
    %1962 = vmatpush1.msra.mxu0 0.0
    %1963 = vmatprep.subr.mxu0 0.0
    %1964 = vmatpush1.msra.mxu0 0.0
    %1965 = vmatprep.subr.mxu0 0.0
    %1966 = vmatpush1.msra.mxu0 0.0
    %1967 = vmatprep.subr.mxu0 0.0
    %1968 = vmatpush1.msra.mxu0 0.0
    %1969 = vmatprep.mubr.f32.mxu0 0.0
    %1970 = vmatmul.mubr.f32.gmra.mrb[0].mxu0 %v1903
    %v1971 = vpop.f32.mrb[0].mxu0
    %v1972 = vadd.f32 0.0, %v1971
    %v1973 = vpop.f32.mrb[0].mxu0
    %1974 = vdwg.mxu0
    %v1977 = vunpack.c.l.s4 1966171168
    %v1978 = vunpack.c.0.s8 %v1977
    %v1979 = vlaneseq
    %v1980 = vshrl.u32 %v1979, 7
    %v1981 = vsub.s32 %v1978, %v1980
    %v1982 = vrot.slane %v1972, %v1981
    %v1983 = vcombine.high %v1982, %v1982
    %v1985 = vunpack.c.l.s4 1966171168
    %v1986 = vunpack.c.0.s8 %v1985
    %v1987 = vlaneseq
    %v1988 = vshrl.u32 %v1987, 7
    %v1989 = vsub.s32 %v1986, %v1988
    %v1990 = vrot.slane %v1982, %v1989
    %v1992 = vunpack.c.l.s4 1966171168
    %v1993 = vunpack.c.0.s8 %v1992
    %v1994 = vlaneseq
    %v1995 = vshrl.u32 %v1994, 7
    %v1996 = vsub.s32 %v1993, %v1995
    %v1997 = vrot.slane %v1983, %v1996
    %v2000 = vadd.f32 %v1654, %v1990
    %v2001 = vadd.f32 %v1653, %v1997
    %v2002 = vmax.f32 %v2000, 0.0
    %v2003 = vmax.f32 %v2001, 0.0
    %v2004 = vadd.f32 %v1766, %v1884
    %v2005 = vadd.f32 %v1767, %v1885
    %v2006 = vadd.f32 %v2004, %v2002
    %v2007 = vadd.f32 %v2005, %v2003
    %v2008 = vld [vmem:[#allocation7] sm:$0xff]
    %v2009 = vld [vmem:[#allocation7 + $0x8] sm:$0xff]
    %v2010 = vld [vmem:[#allocation7 + $0x10] sm:$0xff]
    %v2011 = vld [vmem:[#allocation7 + $0x18] sm:$0xff]
    %v2012 = vld [vmem:[%s9] sm:$0x1]
    %v2014 = vlaneseq
    %v2015 = vshrl.u32 %v2014, 7
    %v2016 = vsub.s32 0, %v2015
    %v2017 = vrot.slane %v2012, %v2016
    %v2021 = vcombine.low %v2006, %v2007
    %v2023 = vunpack.c.l.s4 1966171168
    %v2024 = vunpack.c.0.s8 %v2023
    %v2025 = vlaneseq
    %v2026 = vshrl.u32 %v2025, 7
    %v2027 = vsub.s32 %v2024, %v2026
    %v2028 = vrot.slane %v2021, %v2027
    %v2030 = vunpack.c.l.s4 1966171168
    %v2031 = vunpack.c.0.s8 %v2030
    %v2032 = vlaneseq
    %v2033 = vshrl.u32 %v2032, 7
    %v2034 = vsub.s32 %v2031, %v2033
    %v2035 = vrot.slane %v2028, %v2034
    %v2036 = vsel %vm1535, %v2035, 0
    %2038 = vmatprep.subr.mxu0 0.0
    %2039 = vmatpush1.msra.mxu0 %v2008
    %2040 = vmatprep.subr.mxu0 0.0
    %2041 = vmatpush1.msra.mxu0 %v2009
    %2042 = vmatprep.subr.mxu0 0.0
    %2043 = vmatpush1.msra.mxu0 %v2010
    %2044 = vmatprep.subr.mxu0 0.0
    %2045 = vmatpush1.msra.mxu0 %v2011
    %2046 = vmatprep.subr.mxu0 0.0
    %2047 = vmatpush1.msra.mxu0 0.0
    %2048 = vmatprep.subr.mxu0 0.0
    %2049 = vmatpush1.msra.mxu0 0.0
    %2050 = vmatprep.subr.mxu0 0.0
    %2051 = vmatpush1.msra.mxu0 0.0
    %2052 = vmatprep.subr.mxu0 0.0
    %2053 = vmatpush1.msra.mxu0 0.0
    %2054 = vmatprep.subr.mxu0 0.0
    %2055 = vmatpush1.msra.mxu0 0.0
    %2056 = vmatprep.subr.mxu0 0.0
    %2057 = vmatpush1.msra.mxu0 0.0
    %2058 = vmatprep.subr.mxu0 0.0
    %2059 = vmatpush1.msra.mxu0 0.0
    %2060 = vmatprep.subr.mxu0 0.0
    %2061 = vmatpush1.msra.mxu0 0.0
    %2062 = vmatprep.subr.mxu0 0.0
    %2063 = vmatpush1.msra.mxu0 0.0
    %2064 = vmatprep.subr.mxu0 0.0
    %2065 = vmatpush1.msra.mxu0 0.0
    %2066 = vmatprep.subr.mxu0 0.0
    %2067 = vmatpush1.msra.mxu0 0.0
    %2068 = vmatprep.subr.mxu0 0.0
    %2069 = vmatpush1.msra.mxu0 0.0
    %2070 = vmatprep.subr.mxu0 0.0
    %2071 = vmatpush1.msra.mxu0 0.0
    %2072 = vmatprep.subr.mxu0 0.0
    %2073 = vmatpush1.msra.mxu0 0.0
    %2074 = vmatprep.subr.mxu0 0.0
    %2075 = vmatpush1.msra.mxu0 0.0
    %2076 = vmatprep.subr.mxu0 0.0
    %2077 = vmatpush1.msra.mxu0 0.0
    %2078 = vmatprep.subr.mxu0 0.0
    %2079 = vmatpush1.msra.mxu0 0.0
    %2080 = vmatprep.subr.mxu0 0.0
    %2081 = vmatpush1.msra.mxu0 0.0
    %2082 = vmatprep.subr.mxu0 0.0
    %2083 = vmatpush1.msra.mxu0 0.0
    %2084 = vmatprep.subr.mxu0 0.0
    %2085 = vmatpush1.msra.mxu0 0.0
    %2086 = vmatprep.subr.mxu0 0.0
    %2087 = vmatpush1.msra.mxu0 0.0
    %2088 = vmatprep.subr.mxu0 0.0
    %2089 = vmatpush1.msra.mxu0 0.0
    %2090 = vmatprep.subr.mxu0 0.0
    %2091 = vmatpush1.msra.mxu0 0.0
    %2092 = vmatprep.subr.mxu0 0.0
    %2093 = vmatpush1.msra.mxu0 0.0
    %2094 = vmatprep.subr.mxu0 0.0
    %2095 = vmatpush1.msra.mxu0 0.0
    %2096 = vmatprep.subr.mxu0 0.0
    %2097 = vmatpush1.msra.mxu0 0.0
    %2098 = vmatprep.subr.mxu0 0.0
    %2099 = vmatpush1.msra.mxu0 0.0
    %2100 = vmatprep.subr.mxu0 0.0
    %2101 = vmatpush1.msra.mxu0 0.0
    %2102 = vmatprep.mubr.f32.mxu0 0.0
    %2103 = vmatmul.mubr.f32.gmra.mrb[0].mxu0 %v2036
    %v2104 = vpop.f32.mrb[0].mxu0
    %v2105 = vadd.f32 %v2017, %v2104
    %v2106 = vpop.f32.mrb[0].mxu0
    %2107 = vdwg.mxu0
    %2108 = vst [vmem:[#allocation8] sm:$0x3] %v2105
    // Predicated region
    $region54: #{forward.1} parent=1 // pred_check
      _
    $region55: #{forward.1} parent=1 // pred_check_branch
      %2110 = sbr.rel (0) target = $region57
    $region56: #{forward.1} parent=1 // pred_region
      %s2112 = ssub.s32 32, 32
      %2113 = vsyncadd [#allocation4], %s2112
      %s2115 = sshll.u32 [#allocation8], 4
      %s2116 = int_to_ptr.vmem [resolvable:$true] %s2115
      %2118 = dma.vmem_to_hbm [thread:$0]  %s2116, 32, %s10, [#allocation4]
    $region57: #{forward.1} parent=1 // pred_fallthru
      _
    // Predicated region
    $region58: #{forward.1} parent=1 // pred_check
      _
    $region59: #{forward.1} parent=1 // pred_check_branch
      %2120 = sbr.rel (0) target = $region61
    $region60: #{forward.1} parent=1 // pred_region
      %2121 = dma.done [#allocation4], 32
    $region61: #{forward.1} parent=1 // pred_fallthru
      _
    %2122 = vsyncpa [#allocation3], 1
    %2123 = vsyncpa [#allocation6], 1
    %2124 = vsyncpa [#allocation4], 1

</llo_original>
